<compile_context>
chip_gen: v6e
topology: v6e:2x2x1
jax: 0.10.0
libtpu: 0.0.40
codegen_flags: <defaults>
</compile_context>

<pallas_src>
import math
import functools

import jax
import jax.numpy as jnp
from jax.experimental import pallas as pl
from jax.experimental.pallas import tpu as pltpu


_ARG_ORDER = ("wq", "wk", "wv", "bqkv", "wo", "bo", "w12",
              "gamma", "beta", "hmask", "amask", "seg", "segc")


def _mhsa_kernel(x_ref, wq_ref, wk_ref, wv_ref, bqkv_ref, wo_ref, bo_ref,
                 w12_ref, gamma_ref, beta_ref, hmask_ref, amask_ref, seg_ref,
                 segc_ref, o_ref, *, n_heads, eps):
    f32 = jnp.float32
    mxu_dt = wq_ref.dtype                      # bf16 on v6e/v7x, f32 on v5e

    gamma = gamma_ref[...]                     # (1, C)  f32
    beta = beta_ref[...]                       # (1, C)  f32
    bqkv = bqkv_ref[...]                       # (3, C)  f32  rows: q|k|v (q pre-scaled)

    def layernorm(z):                          # elementwise math stays f32 (v5e-safe)
        mu = jnp.mean(z, axis=-1, keepdims=True)
        zc = z - mu
        var = jnp.mean(zc * zc, axis=-1, keepdims=True)
        return zc * jax.lax.rsqrt(var + eps) * gamma + beta

    # Batch is stacked on sublanes: x is (N*L, C); every dense op below runs once.
    x = x_ref[...].astype(f32)
    xn = layernorm(x)
    xn_m = xn.astype(mxu_dt)

    # ---- fused q/k/v Linear + MHA in_proj (folded offline, q pre-scaled by
    #      1/sqrt(head_dim)); three separate (C, C) weights keep every matmul
    #      operand lane-aligned. ----
    q2 = jnp.dot(xn_m, wq_ref[...], preferred_element_type=f32) + bqkv[0:1, :]   # (NL, C)
    k2 = jnp.dot(xn_m, wk_ref[...], preferred_element_type=f32) + bqkv[1:2, :]   # (NL, C)
    v2 = jnp.dot(xn_m, wv_ref[...], preferred_element_type=f32) + bqkv[2:3, :]   # (NL, C)

    # ---- block-diagonal multi-head attention, all heads AND all batch elements at
    #      once.  Row r = h*(N*L) + n*L + j of k_rows/v_rows is token (n, j) masked
    #      to head h's channels (sublane repeat + 0/1 mask; no selection matmul). ----
    hmask = hmask_ref[...]                     # (H*N*L, C) 0/1 in MXU dtype
    def head_rows(t):
        t = t.astype(mxu_dt)
        return jnp.concatenate([t] * n_heads, axis=0) * hmask
    k_rows = head_rows(k2)                     # (H*N*L, C)
    v_rows = head_rows(v2)                     # (H*N*L, C)

    # s[row, h*NL + n*L + j] = <q_h[row], k_h[(n, j)]> for every head: one matmul.
    s = jax.lax.dot_general(q2.astype(mxu_dt), k_rows, (((1,), (1,)), ((), ())),
                            preferred_element_type=f32)          # (N*L, H*N*L)
    s = s + amask_ref[...]                     # additive -1e30 on cross-batch columns

    # Per-(row, head) softmax.  m is the row max over the row's own batch (>= each
    # head segment's max, hence a valid stabiliser); den is clamped so a segment
    # that fully underflows cannot produce Inf/NaN through the reciprocal.
    m = jnp.max(s, axis=-1, keepdims=True)
    u = jnp.exp(s - m)                         # cross-batch -> exp(-1e30) == 0
    den = jnp.dot(u, seg_ref[...], preferred_element_type=f32)   # (N*L, H)
    den = jnp.maximum(den, 1e-30)
    dinv = pl.reciprocal(den, approx=True)     # EUP estimate (off the VPU)
    dinv = dinv * (2.0 - den * dinv)           # one Newton step -> ~f32 accuracy

    # Unnormalised head outputs in one matmul (v_rows' head mask keeps every output
    # channel tied to its own head); normalise per channel via a tiny (H, C) matmul
    # instead of scaling the (N*L, H*N*L) probability matrix.
    heads_un = jnp.dot(u.astype(mxu_dt), v_rows, preferred_element_type=f32)     # (NL, C)
    dinv_c = jnp.dot(dinv, segc_ref[...], preferred_element_type=f32)            # (NL, C)
    heads = heads_un * dinv_c

    attn = jnp.dot(heads.astype(mxu_dt), wo_ref[...], preferred_element_type=f32) + bo_ref[...]
    x1 = attn + xn                             # torch code adds the *normed* x

    # Second LayerNorm: the torch block reuses the SAME nn.LayerNorm instance, so
    # gamma/beta are shared.  fc2(fc1(.)) has no activation in between in the torch
    # code, so the offline fold into one (C, C) matrix is exact.
    x2 = layernorm(x1)
    y = jnp.dot(x2.astype(mxu_dt), w12_ref[...], preferred_element_type=f32) + x2

    # Single full-array store (the old per-batch, lane-offset partial stores are gone).
    o_ref[...] = y.astype(o_ref.dtype)


def fuse_params(p, seq_len, n_batch, c, mxu_dtype=jnp.bfloat16):
    """Offline algebraic folds + constant masks for the batched block-diagonal kernel."""
    h = c // 2                                 # num_heads (MHSA uses c // 2)
    d = c // h                                 # head_dim == 2
    scale = 1.0 / math.sqrt(d)
    wq_f = (p["wq_t"] @ p["wiq_t"]) * scale    # fold q Linear with in_proj (+ scale)
    wk_f = p["wk_t"] @ p["wik_t"]
    wv_f = p["wv_t"] @ p["wiv_t"]
    w12 = p["w1_t"] @ p["w2_t"]                # fc1 @ fc2 (no activation in between)
    bqkv = jnp.concatenate([p["biq"] * scale, p["bik"], p["biv"]], axis=0)  # (3, C)

    nl = n_batch * seq_len
    hnl = h * nl
    rows = jnp.arange(hnl)
    head_of_row = rows // nl                   # (H*N*L,)
    batch_of_row = (rows % nl) // seq_len      # (H*N*L,)
    ch = jnp.arange(c)
    q_batch = jnp.arange(nl) // seq_len        # (N*L,)

    hmask = (head_of_row[:, None] == (ch[None, :] // d)).astype(mxu_dtype)        # (HNL, C)
    amask = jnp.where(q_batch[:, None] == batch_of_row[None, :],
                      0.0, -1e30).astype(jnp.float32)                             # (NL, HNL)
    seg = (head_of_row[:, None] == jnp.arange(h)[None, :]).astype(jnp.float32)    # (HNL, H)
    segc = (jnp.arange(h)[:, None] == (ch[None, :] // d)).astype(jnp.float32)     # (H, C)

    return {
        "wq": wq_f.astype(mxu_dtype), "wk": wk_f.astype(mxu_dtype),
        "wv": wv_f.astype(mxu_dtype),
        "bqkv": bqkv.astype(jnp.float32),
        "wo": p["wo_t"].astype(mxu_dtype), "bo": p["bo"].astype(jnp.float32),
        "w12": w12.astype(mxu_dtype),
        "gamma": p["gamma"].astype(jnp.float32), "beta": p["beta"].astype(jnp.float32),
        "hmask": hmask, "amask": amask, "seg": seg, "segc": segc,
    }


@jax.jit
def mhsa_forward(x_lnc, fused):
    """x_lnc: (L, N, C) -- the layout nn.MultiheadAttention (batch_first=False) sees."""
    L, N, C = x_lnc.shape
    H = C // 2
    nl, hnl = N * L, H * N * L

    # Stack batch on sublanes (one tiny wrapper transpose); every dense op in the
    # kernel then runs once on the (N*L, C) slab.
    x_rows = jnp.transpose(x_lnc, (1, 0, 2)).reshape(nl, C)

    args = (x_rows,) + tuple(fused[k] for k in _ARG_ORDER)
    flops = 2 * (3 * nl * C * C        # q/k/v projections
                 + nl * C * hnl        # scores
                 + nl * hnl * H        # softmax denominators
                 + nl * hnl * C        # P @ V
                 + nl * H * C          # 1/den head->channel broadcast
                 + 2 * nl * C * C)     # out_proj + folded MLP
    transcendentals = nl * hnl + nl * H + 2 * nl
    bytes_accessed = (sum(int(a.size) * a.dtype.itemsize for a in args)
                      + nl * C * x_lnc.dtype.itemsize)

    vmem = pl.BlockSpec(memory_space=pltpu.MemorySpace.VMEM)   # whole-array, VMEM-resident
    kernel = functools.partial(_mhsa_kernel, n_heads=H, eps=1e-5)
    out = pl.pallas_call(
        kernel,
        out_shape=jax.ShapeDtypeStruct((nl, C), x_lnc.dtype),
        in_specs=[vmem] * len(args),
        out_specs=vmem,
        compiler_params=pltpu.CompilerParams(vmem_limit_bytes=4 * 1024 * 1024),
        cost_estimate=pl.CostEstimate(flops=flops,
                                      transcendentals=transcendentals,
                                      bytes_accessed=bytes_accessed),
    )(*args)
    return out.reshape(N, L, C).transpose(1, 0, 2)


def mhsa_reference(x, p):
    """Pure-JAX mirror of the PyTorch MHSA block (uses the UNFUSED params, so it
    independently validates all the offline weight folds as well)."""
    L, N, C = x.shape
    nh = C // 2
    dh = C // nh

    def ln(z):
        mu = z.mean(-1, keepdims=True)
        var = ((z - mu) ** 2).mean(-1, keepdims=True)
        return (z - mu) / jnp.sqrt(var + 1e-5) * p["gamma"][0] + p["beta"][0]

    xn = ln(x)
    q = xn @ p["wq_t"]
    k = xn @ p["wk_t"]
    v = xn @ p["wv_t"]
    q2 = (q @ p["wiq_t"] + p["biq"][0]) * (1.0 / math.sqrt(dh))
    k2 = k @ p["wik_t"] + p["bik"][0]
    v2 = v @ p["wiv_t"] + p["biv"][0]
    qh = q2.reshape(L, N, nh, dh)
    kh = k2.reshape(L, N, nh, dh)
    vh = v2.reshape(L, N, nh, dh)
    s = jnp.einsum("lnhd,mnhd->nhlm", qh, kh)
    pw = jax.nn.softmax(s, axis=-1)
    o = jnp.einsum("nhlm,mnhd->lnhd", pw, vh).reshape(L, N, C)
    o = o @ p["wo_t"] + p["bo"][0]
    x1 = o + xn
    x2 = ln(x1)
    return (x2 @ p["w1_t"]) @ p["w2_t"] + x2


def init_params(key, c):
    ks = jax.random.split(key, 12)
    s = 0.1                                   # ~nn.Linear default scale for fan_in=32
    # PyTorch Linear stores (out, in); we keep W^T so y = x @ W^T_torch == x @ w_t.
    wq = s * jax.random.normal(ks[0], (c, c), jnp.float32)
    wk = s * jax.random.normal(ks[1], (c, c), jnp.float32)
    wv = s * jax.random.normal(ks[2], (c, c), jnp.float32)
    in_proj_w = s * jax.random.normal(ks[3], (3 * c, c), jnp.float32)
    in_proj_b = s * jax.random.normal(ks[4], (3 * c,), jnp.float32)
    wo = s * jax.random.normal(ks[5], (c, c), jnp.float32)
    bo = s * jax.random.normal(ks[6], (c,), jnp.float32)
    w1 = s * jax.random.normal(ks[7], (2 * c, c), jnp.float32)
    w2 = s * jax.random.normal(ks[8], (c, 2 * c), jnp.float32)
    gamma = 1.0 + 0.1 * jax.random.normal(ks[9], (c,), jnp.float32)
    beta = 0.1 * jax.random.normal(ks[10], (c,), jnp.float32)
    return {
        "wq_t": wq.T, "wk_t": wk.T, "wv_t": wv.T,
        "wiq_t": in_proj_w[0 * c:1 * c].T,
        "wik_t": in_proj_w[1 * c:2 * c].T,
        "wiv_t": in_proj_w[2 * c:3 * c].T,
        "biq": in_proj_b[0 * c:1 * c].reshape(1, c),
        "bik": in_proj_b[1 * c:2 * c].reshape(1, c),
        "biv": in_proj_b[2 * c:3 * c].reshape(1, c),
        "wo_t": wo.T, "bo": bo.reshape(1, c),
        "w1_t": w1.T, "w2_t": w2.T,
        "gamma": gamma.reshape(1, c), "beta": beta.reshape(1, c),
    }


if __name__ == "__main__":
    # MHSA(32) from Res_trans: C=32 -> num_heads=16, head_dim=2.  nn.MultiheadAttention
    # is batch_first=False, so dim 0 is the attention sequence and dim 1 the batch.
    L, N, C = 16, 2, 32
    key = jax.random.PRNGKey(0)
    kp, kx = jax.random.split(key)
    params = init_params(kp, C)
    x = jax.random.normal(kx, (L, N, C), jnp.float32)
    y_ref = mhsa_reference(x, params)

    # 1) Exact-precision path (f32 MXU operands): tight check of the algebraic folds
    #    and of the batched block-diagonal attention formulation.
    fused_f32 = fuse_params(params, L, N, C, mxu_dtype=jnp.float32)
    y32 = jax.block_until_ready(mhsa_forward(x, fused_f32))
    err32 = float(jnp.max(jnp.abs(y32 - y_ref)))
    assert err32 < 1e-2, f"f32 kernel mismatch vs reference, max abs err = {err32}"

    # 2) Performance path (per review, v6e/v7x): bf16 MXU operands with f32
    #    accumulation; LayerNorm / softmax / reciprocal stay f32.
    fused_bf16 = fuse_params(params, L, N, C, mxu_dtype=jnp.bfloat16)
    ybf = jax.block_until_ready(mhsa_forward(x, fused_bf16))
    errbf = float(jnp.max(jnp.abs(ybf - y_ref)))
    assert errbf < 5e-2, f"bf16-MXU kernel mismatch vs reference, max abs err = {errbf}"

    print("KERNEL_OK")
</pallas_src>

<mosaic_0001>
module attributes {stable_mosaic.version = 11 : i64} {
  func.func @_mhsa_kernel(%arg0: memref<32x32xf32, #tpu.memory_space<vmem>>, %arg1: memref<32x32xf32, #tpu.memory_space<vmem>>, %arg2: memref<32x32xf32, #tpu.memory_space<vmem>>, %arg3: memref<32x32xf32, #tpu.memory_space<vmem>>, %arg4: memref<3x32xf32, #tpu.memory_space<vmem>>, %arg5: memref<32x32xf32, #tpu.memory_space<vmem>>, %arg6: memref<1x32xf32, #tpu.memory_space<vmem>>, %arg7: memref<32x32xf32, #tpu.memory_space<vmem>>, %arg8: memref<1x32xf32, #tpu.memory_space<vmem>>, %arg9: memref<1x32xf32, #tpu.memory_space<vmem>>, %arg10: memref<512x32xf32, #tpu.memory_space<vmem>>, %arg11: memref<32x512xf32, #tpu.memory_space<vmem>>, %arg12: memref<512x16xf32, #tpu.memory_space<vmem>>, %arg13: memref<16x32xf32, #tpu.memory_space<vmem>>, %arg14: memref<32x32xf32, #tpu.memory_space<vmem>>) attributes {dimension_semantics = [], scalar_prefetch = 0 : i64, scratch_operands = 0 : i64, tpu.core_type = #tpu.core_type<tc>} {
    %c0 = arith.constant 0 : index
    %c0_0 = arith.constant 0 : index
    %0 = vector.load %arg8[%c0, %c0_0] : memref<1x32xf32, #tpu.memory_space<vmem>>, vector<1x32xf32>
    %c0_1 = arith.constant 0 : index
    %c0_2 = arith.constant 0 : index
    %1 = vector.load %arg9[%c0_1, %c0_2] : memref<1x32xf32, #tpu.memory_space<vmem>>, vector<1x32xf32>
    %c0_3 = arith.constant 0 : index
    %c0_4 = arith.constant 0 : index
    %2 = vector.load %arg4[%c0_3, %c0_4] : memref<3x32xf32, #tpu.memory_space<vmem>>, vector<3x32xf32>
    %c0_5 = arith.constant 0 : index
    %c0_6 = arith.constant 0 : index
    %3 = vector.load %arg0[%c0_5, %c0_6] : memref<32x32xf32, #tpu.memory_space<vmem>>, vector<32x32xf32>
    %cst = arith.constant dense<0.000000e+00> : vector<32xf32>
    %4 = vector.multi_reduction <add>, %3, %cst [1] : vector<32x32xf32> to vector<32xf32>
    %5 = vector.shape_cast %4 : vector<32xf32> to vector<32x1xf32>
    %cst_7 = arith.constant 3.200000e+01 : f32
    %6 = vector.broadcast %cst_7 : f32 to vector<32x1xf32>
    %7 = arith.divf %5, %6 : vector<32x1xf32>
    %8 = vector.broadcast %7 : vector<32x1xf32> to vector<32x32xf32>
    %9 = arith.subf %3, %8 : vector<32x32xf32>
    %10 = arith.mulf %9, %9 : vector<32x32xf32>
    %cst_8 = arith.constant dense<0.000000e+00> : vector<32xf32>
    %11 = vector.multi_reduction <add>, %10, %cst_8 [1] : vector<32x32xf32> to vector<32xf32>
    %12 = vector.shape_cast %11 : vector<32xf32> to vector<32x1xf32>
    %cst_9 = arith.constant 3.200000e+01 : f32
    %13 = vector.broadcast %cst_9 : f32 to vector<32x1xf32>
    %14 = arith.divf %12, %13 : vector<32x1xf32>
    %cst_10 = arith.constant 9.99999974E-6 : f32
    %15 = vector.broadcast %cst_10 : f32 to vector<32x1xf32>
    %16 = arith.addf %14, %15 : vector<32x1xf32>
    %17 = math.rsqrt %16 : vector<32x1xf32>
    %18 = vector.broadcast %17 : vector<32x1xf32> to vector<32x32xf32>
    %19 = arith.mulf %9, %18 : vector<32x32xf32>
    %20 = vector.broadcast %0 : vector<1x32xf32> to vector<32x32xf32>
    %21 = arith.mulf %19, %20 : vector<32x32xf32>
    %22 = vector.broadcast %1 : vector<1x32xf32> to vector<32x32xf32>
    %23 = arith.addf %21, %22 : vector<32x32xf32>
    %c0_11 = arith.constant 0 : index
    %c0_12 = arith.constant 0 : index
    %24 = vector.load %arg1[%c0_11, %c0_12] : memref<32x32xf32, #tpu.memory_space<vmem>>, vector<32x32xf32>
    %cst_13 = arith.constant dense<0.000000e+00> : vector<32x32xf32>
    %25 = tpu.matmul %23, %24, %cst_13 {dimension_numbers = #tpu.dot_dimension_numbers<[1], [0], [0], [1], [0, 0, 1, 1], [], []>} : vector<32x32xf32>, vector<32x32xf32>, vector<32x32xf32> -> vector<32x32xf32>
    %26 = vector.extract_strided_slice %2 {offsets = [0, 0], sizes = [1, 32], strides = [1, 1]} : vector<3x32xf32> to vector<1x32xf32>
    %27 = vector.broadcast %26 : vector<1x32xf32> to vector<32x32xf32>
    %28 = arith.addf %25, %27 : vector<32x32xf32>
    %c0_14 = arith.constant 0 : index
    %c0_15 = arith.constant 0 : index
    %29 = vector.load %arg2[%c0_14, %c0_15] : memref<32x32xf32, #tpu.memory_space<vmem>>, vector<32x32xf32>
    %cst_16 = arith.constant dense<0.000000e+00> : vector<32x32xf32>
    %30 = tpu.matmul %23, %29, %cst_16 {dimension_numbers = #tpu.dot_dimension_numbers<[1], [0], [0], [1], [0, 0, 1, 1], [], []>} : vector<32x32xf32>, vector<32x32xf32>, vector<32x32xf32> -> vector<32x32xf32>
    %31 = vector.extract_strided_slice %2 {offsets = [1, 0], sizes = [1, 32], strides = [1, 1]} : vector<3x32xf32> to vector<1x32xf32>
    %32 = vector.broadcast %31 : vector<1x32xf32> to vector<32x32xf32>
    %33 = arith.addf %30, %32 : vector<32x32xf32>
    %c0_17 = arith.constant 0 : index
    %c0_18 = arith.constant 0 : index
    %34 = vector.load %arg3[%c0_17, %c0_18] : memref<32x32xf32, #tpu.memory_space<vmem>>, vector<32x32xf32>
    %cst_19 = arith.constant dense<0.000000e+00> : vector<32x32xf32>
    %35 = tpu.matmul %23, %34, %cst_19 {dimension_numbers = #tpu.dot_dimension_numbers<[1], [0], [0], [1], [0, 0, 1, 1], [], []>} : vector<32x32xf32>, vector<32x32xf32>, vector<32x32xf32> -> vector<32x32xf32>
    %36 = vector.extract_strided_slice %2 {offsets = [2, 0], sizes = [1, 32], strides = [1, 1]} : vector<3x32xf32> to vector<1x32xf32>
    %37 = vector.broadcast %36 : vector<1x32xf32> to vector<32x32xf32>
    %38 = arith.addf %35, %37 : vector<32x32xf32>
    %c0_20 = arith.constant 0 : index
    %c0_21 = arith.constant 0 : index
    %39 = vector.load %arg10[%c0_20, %c0_21] : memref<512x32xf32, #tpu.memory_space<vmem>>, vector<512x32xf32>
    %40 = tpu.concatenate %33, %33, %33, %33, %33, %33, %33, %33, %33, %33, %33, %33, %33, %33, %33, %33 in 0 : vector<32x32xf32>, vector<32x32xf32>, vector<32x32xf32>, vector<32x32xf32>, vector<32x32xf32>, vector<32x32xf32>, vector<32x32xf32>, vector<32x32xf32>, vector<32x32xf32>, vector<32x32xf32>, vector<32x32xf32>, vector<32x32xf32>, vector<32x32xf32>, vector<32x32xf32>, vector<32x32xf32>, vector<32x32xf32> -> vector<512x32xf32>
    %41 = arith.mulf %40, %39 : vector<512x32xf32>
    %42 = tpu.concatenate %38, %38, %38, %38, %38, %38, %38, %38, %38, %38, %38, %38, %38, %38, %38, %38 in 0 : vector<32x32xf32>, vector<32x32xf32>, vector<32x32xf32>, vector<32x32xf32>, vector<32x32xf32>, vector<32x32xf32>, vector<32x32xf32>, vector<32x32xf32>, vector<32x32xf32>, vector<32x32xf32>, vector<32x32xf32>, vector<32x32xf32>, vector<32x32xf32>, vector<32x32xf32>, vector<32x32xf32>, vector<32x32xf32> -> vector<512x32xf32>
    %43 = arith.mulf %42, %39 : vector<512x32xf32>
    %cst_22 = arith.constant dense<0.000000e+00> : vector<32x512xf32>
    %44 = tpu.matmul %28, %41, %cst_22 {dimension_numbers = #tpu.dot_dimension_numbers<[1], [1], [0], [0], [0, 0, 1, 0], [], []>} : vector<32x32xf32>, vector<512x32xf32>, vector<32x512xf32> -> vector<32x512xf32>
    %c0_23 = arith.constant 0 : index
    %c0_24 = arith.constant 0 : index
    %45 = vector.load %arg11[%c0_23, %c0_24] : memref<32x512xf32, #tpu.memory_space<vmem>>, vector<32x512xf32>
    %46 = arith.addf %44, %45 : vector<32x512xf32>
    %cst_25 = arith.constant dense<0xFF800000> : vector<32xf32>
    %47 = vector.multi_reduction <maximumf>, %46, %cst_25 [1] : vector<32x512xf32> to vector<32xf32>
    %48 = vector.shape_cast %47 : vector<32xf32> to vector<32x1xf32>
    %49 = vector.broadcast %48 : vector<32x1xf32> to vector<32x512xf32>
    %50 = arith.subf %46, %49 : vector<32x512xf32>
    %51 = math.exp %50 : vector<32x512xf32>
    %c0_26 = arith.constant 0 : index
    %c0_27 = arith.constant 0 : index
    %52 = vector.load %arg12[%c0_26, %c0_27] : memref<512x16xf32, #tpu.memory_space<vmem>>, vector<512x16xf32>
    %cst_28 = arith.constant dense<0.000000e+00> : vector<32x16xf32>
    %53 = tpu.matmul %51, %52, %cst_28 {dimension_numbers = #tpu.dot_dimension_numbers<[1], [0], [0], [1], [0, 0, 1, 1], [], []>} : vector<32x512xf32>, vector<512x16xf32>, vector<32x16xf32> -> vector<32x16xf32>
    %cst_29 = arith.constant 1.000000e-30 : f32
    %54 = vector.broadcast %cst_29 : f32 to vector<32x16xf32>
    %55 = arith.maximumf %53, %54 : vector<32x16xf32>
    %56 = tpu.reciprocal %55 {approx = true} : vector<32x16xf32> -> vector<32x16xf32>
    %57 = arith.mulf %55, %56 : vector<32x16xf32>
    %cst_30 = arith.constant 2.000000e+00 : f32
    %58 = vector.broadcast %cst_30 : f32 to vector<32x16xf32>
    %59 = arith.subf %58, %57 : vector<32x16xf32>
    %60 = arith.mulf %56, %59 : vector<32x16xf32>
    %cst_31 = arith.constant dense<0.000000e+00> : vector<32x32xf32>
    %61 = tpu.matmul %51, %43, %cst_31 {dimension_numbers = #tpu.dot_dimension_numbers<[1], [0], [0], [1], [0, 0, 1, 1], [], []>} : vector<32x512xf32>, vector<512x32xf32>, vector<32x32xf32> -> vector<32x32xf32>
    %c0_32 = arith.constant 0 : index
    %c0_33 = arith.constant 0 : index
    %62 = vector.load %arg13[%c0_32, %c0_33] : memref<16x32xf32, #tpu.memory_space<vmem>>, vector<16x32xf32>
    %cst_34 = arith.constant dense<0.000000e+00> : vector<32x32xf32>
    %63 = tpu.matmul %60, %62, %cst_34 {dimension_numbers = #tpu.dot_dimension_numbers<[1], [0], [0], [1], [0, 0, 1, 1], [], []>} : vector<32x16xf32>, vector<16x32xf32>, vector<32x32xf32> -> vector<32x32xf32>
    %64 = arith.mulf %61, %63 : vector<32x32xf32>
    %c0_35 = arith.constant 0 : index
    %c0_36 = arith.constant 0 : index
    %65 = vector.load %arg5[%c0_35, %c0_36] : memref<32x32xf32, #tpu.memory_space<vmem>>, vector<32x32xf32>
    %cst_37 = arith.constant dense<0.000000e+00> : vector<32x32xf32>
    %66 = tpu.matmul %64, %65, %cst_37 {dimension_numbers = #tpu.dot_dimension_numbers<[1], [0], [0], [1], [0, 0, 1, 1], [], []>} : vector<32x32xf32>, vector<32x32xf32>, vector<32x32xf32> -> vector<32x32xf32>
    %c0_38 = arith.constant 0 : index
    %c0_39 = arith.constant 0 : index
    %67 = vector.load %arg6[%c0_38, %c0_39] : memref<1x32xf32, #tpu.memory_space<vmem>>, vector<1x32xf32>
    %68 = vector.broadcast %67 : vector<1x32xf32> to vector<32x32xf32>
    %69 = arith.addf %66, %68 : vector<32x32xf32>
    %70 = arith.addf %69, %23 : vector<32x32xf32>
    %cst_40 = arith.constant dense<0.000000e+00> : vector<32xf32>
    %71 = vector.multi_reduction <add>, %70, %cst_40 [1] : vector<32x32xf32> to vector<32xf32>
    %72 = vector.shape_cast %71 : vector<32xf32> to vector<32x1xf32>
    %cst_41 = arith.constant 3.200000e+01 : f32
    %73 = vector.broadcast %cst_41 : f32 to vector<32x1xf32>
    %74 = arith.divf %72, %73 : vector<32x1xf32>
    %75 = vector.broadcast %74 : vector<32x1xf32> to vector<32x32xf32>
    %76 = arith.subf %70, %75 : vector<32x32xf32>
    %77 = arith.mulf %76, %76 : vector<32x32xf32>
    %cst_42 = arith.constant dense<0.000000e+00> : vector<32xf32>
    %78 = vector.multi_reduction <add>, %77, %cst_42 [1] : vector<32x32xf32> to vector<32xf32>
    %79 = vector.shape_cast %78 : vector<32xf32> to vector<32x1xf32>
    %cst_43 = arith.constant 3.200000e+01 : f32
    %80 = vector.broadcast %cst_43 : f32 to vector<32x1xf32>
    %81 = arith.divf %79, %80 : vector<32x1xf32>
    %cst_44 = arith.constant 9.99999974E-6 : f32
    %82 = vector.broadcast %cst_44 : f32 to vector<32x1xf32>
    %83 = arith.addf %81, %82 : vector<32x1xf32>
    %84 = math.rsqrt %83 : vector<32x1xf32>
    %85 = vector.broadcast %84 : vector<32x1xf32> to vector<32x32xf32>
    %86 = arith.mulf %76, %85 : vector<32x32xf32>
    %87 = vector.broadcast %0 : vector<1x32xf32> to vector<32x32xf32>
    %88 = arith.mulf %86, %87 : vector<32x32xf32>
    %89 = vector.broadcast %1 : vector<1x32xf32> to vector<32x32xf32>
    %90 = arith.addf %88, %89 : vector<32x32xf32>
    %c0_45 = arith.constant 0 : index
    %c0_46 = arith.constant 0 : index
    %91 = vector.load %arg7[%c0_45, %c0_46] : memref<32x32xf32, #tpu.memory_space<vmem>>, vector<32x32xf32>
    %cst_47 = arith.constant dense<0.000000e+00> : vector<32x32xf32>
    %92 = tpu.matmul %90, %91, %cst_47 {dimension_numbers = #tpu.dot_dimension_numbers<[1], [0], [0], [1], [0, 0, 1, 1], [], []>} : vector<32x32xf32>, vector<32x32xf32>, vector<32x32xf32> -> vector<32x32xf32>
    %93 = arith.addf %92, %90 : vector<32x32xf32>
    %c0_48 = arith.constant 0 : index
    %c0_49 = arith.constant 0 : index
    %94 = vector.load %arg14[%c0_48, %c0_49] : memref<32x32xf32, #tpu.memory_space<vmem>>, vector<32x32xf32>
    tpu.vector_store %arg14[%c0_48, %c0_49], %93 {strides = array<i32>} : memref<32x32xf32, #tpu.memory_space<vmem>>, vector<32x32xf32>,
    return
  }
}

</mosaic_0001>

<llo_original>
// kernel: mhsa_forward.1
$region0: #{mhsa_forward.1}
  #allocation0 [shape = 'u32[]', space=smem, size = 0x4, offset = 0x4, fixed_abs, tag = 'smem constant byte address 0x4 - core index']
  #allocation1 [shape = 'u32[144,128]{1,0:T(1,128)}', space=vmem, size = 0x12000, scoped, tag = 'internal scratch']
  %s0 = inlined_call_operand.vmem [shape: f32[32,32], index: 0, kind: input, shape index: {}]
  %s1 = inlined_call_operand.vmem [shape: f32[32,32], index: 1, kind: input, shape index: {}]
  %s2 = inlined_call_operand.vmem [shape: f32[32,32], index: 2, kind: input, shape index: {}]
  %s3 = inlined_call_operand.vmem [shape: f32[32,32], index: 3, kind: input, shape index: {}]
  %s4 = inlined_call_operand.vmem [shape: f32[3,32], index: 4, kind: input, shape index: {}]
  %s5 = inlined_call_operand.vmem [shape: f32[32,32], index: 5, kind: input, shape index: {}]
  %s6 = inlined_call_operand.vmem [shape: f32[1,32], index: 6, kind: input, shape index: {}]
  %s7 = inlined_call_operand.vmem [shape: f32[32,32], index: 7, kind: input, shape index: {}]
  %s8 = inlined_call_operand.vmem [shape: f32[1,32], index: 8, kind: input, shape index: {}]
  %s9 = inlined_call_operand.vmem [shape: f32[1,32], index: 9, kind: input, shape index: {}]
  %s10 = inlined_call_operand.vmem [shape: f32[512,32], index: 10, kind: input, shape index: {}]
  %s11 = inlined_call_operand.vmem [shape: f32[32,512], index: 11, kind: input, shape index: {}]
  %s12 = inlined_call_operand.vmem [shape: f32[512,16], index: 12, kind: input, shape index: {}]
  %s13 = inlined_call_operand.vmem [shape: f32[16,32], index: 13, kind: input, shape index: {}]
  %s14 = inlined_call_operand.vmem [shape: f32[32,32], index: 14, kind: output, shape index: {}]
  %s15 = sld [smem:[#allocation0]]
  $region66: #{mhsa_forward.1} parent=0
    _
  %s17 = ssub.s32 1, %s15
  %s18 = scalar_select 0, %s17, %s15
  // Predicated region
  $region2: #{mhsa_forward.1} parent=0 // pred_check
    _
  $region3: #{mhsa_forward.1} parent=0 // pred_check_branch
    %20 = sbr.rel (0) target = $region5
  $region4: #{mhsa_forward.1} parent=0 // pred_region
    _
  $region5: #{mhsa_forward.1} parent=0 // pred_fallthru
    _
  // Predicated region
  $region6: #{mhsa_forward.1} parent=0 // pred_check
    _
  $region7: #{mhsa_forward.1} parent=0 // pred_check_branch
    %22 = sbr.rel (0) target = $region9
  $region8: #{mhsa_forward.1} parent=0 // pred_region
    _
  $region9: #{mhsa_forward.1} parent=0 // pred_fallthru
    _
  // Predicated region
  $region10: #{mhsa_forward.1} parent=0 // pred_check
    _
  $region11: #{mhsa_forward.1} parent=0 // pred_check_branch
    %24 = sbr.rel (0) target = $region13
  $region12: #{mhsa_forward.1} parent=0 // pred_region
    _
  $region13: #{mhsa_forward.1} parent=0 // pred_fallthru
    _
  // Predicated region
  $region14: #{mhsa_forward.1} parent=0 // pred_check
    _
  $region15: #{mhsa_forward.1} parent=0 // pred_check_branch
    %26 = sbr.rel (0) target = $region17
  $region16: #{mhsa_forward.1} parent=0 // pred_region
    _
  $region17: #{mhsa_forward.1} parent=0 // pred_fallthru
    _
  // Predicated region
  $region18: #{mhsa_forward.1} parent=0 // pred_check
    _
  $region19: #{mhsa_forward.1} parent=0 // pred_check_branch
    %28 = sbr.rel (0) target = $region21
  $region20: #{mhsa_forward.1} parent=0 // pred_region
    _
  $region21: #{mhsa_forward.1} parent=0 // pred_fallthru
    _
  // Predicated region
  $region22: #{mhsa_forward.1} parent=0 // pred_check
    _
  $region23: #{mhsa_forward.1} parent=0 // pred_check_branch
    %30 = sbr.rel (0) target = $region25
  $region24: #{mhsa_forward.1} parent=0 // pred_region
    _
  $region25: #{mhsa_forward.1} parent=0 // pred_fallthru
    _
  // Predicated region
  $region26: #{mhsa_forward.1} parent=0 // pred_check
    _
  $region27: #{mhsa_forward.1} parent=0 // pred_check_branch
    %32 = sbr.rel (0) target = $region29
  $region28: #{mhsa_forward.1} parent=0 // pred_region
    _
  $region29: #{mhsa_forward.1} parent=0 // pred_fallthru
    _
  // Predicated region
  $region30: #{mhsa_forward.1} parent=0 // pred_check
    _
  $region31: #{mhsa_forward.1} parent=0 // pred_check_branch
    %34 = sbr.rel (0) target = $region33
  $region32: #{mhsa_forward.1} parent=0 // pred_region
    _
  $region33: #{mhsa_forward.1} parent=0 // pred_fallthru
    _
  // Predicated region
  $region34: #{mhsa_forward.1} parent=0 // pred_check
    _
  $region35: #{mhsa_forward.1} parent=0 // pred_check_branch
    %36 = sbr.rel (0) target = $region37
  $region36: #{mhsa_forward.1} parent=0 // pred_region
    _
  $region37: #{mhsa_forward.1} parent=0 // pred_fallthru
    _
  // Predicated region
  $region38: #{mhsa_forward.1} parent=0 // pred_check
    _
  $region39: #{mhsa_forward.1} parent=0 // pred_check_branch
    %38 = sbr.rel (0) target = $region41
  $region40: #{mhsa_forward.1} parent=0 // pred_region
    _
  $region41: #{mhsa_forward.1} parent=0 // pred_fallthru
    _
  // Predicated region
  $region42: #{mhsa_forward.1} parent=0 // pred_check
    _
  $region43: #{mhsa_forward.1} parent=0 // pred_check_branch
    %40 = sbr.rel (0) target = $region45
  $region44: #{mhsa_forward.1} parent=0 // pred_region
    _
  $region45: #{mhsa_forward.1} parent=0 // pred_fallthru
    _
  // Predicated region
  $region46: #{mhsa_forward.1} parent=0 // pred_check
    _
  $region47: #{mhsa_forward.1} parent=0 // pred_check_branch
    %42 = sbr.rel (0) target = $region49
  $region48: #{mhsa_forward.1} parent=0 // pred_region
    _
  $region49: #{mhsa_forward.1} parent=0 // pred_fallthru
    _
  // Predicated region
  $region50: #{mhsa_forward.1} parent=0 // pred_check
    _
  $region51: #{mhsa_forward.1} parent=0 // pred_check_branch
    %44 = sbr.rel (0) target = $region53
  $region52: #{mhsa_forward.1} parent=0 // pred_region
    _
  $region53: #{mhsa_forward.1} parent=0 // pred_fallthru
    _
  // Predicated region
  $region54: #{mhsa_forward.1} parent=0 // pred_check
    _
  $region55: #{mhsa_forward.1} parent=0 // pred_check_branch
    %46 = sbr.rel (0) target = $region57
  $region56: #{mhsa_forward.1} parent=0 // pred_region
    _
  $region57: #{mhsa_forward.1} parent=0 // pred_fallthru
    _
  %v47 = vld [vmem:[%s8] sm:$0x1]
  %v48 = vld [vmem:[%s9] sm:$0x1]
  %v49 = vld [vmem:[%s4] sm:$0x7]
  %v50 = vld [vmem:[%s0] sm:$0xff]
  %v51 = vld [vmem:[%s0 + $0x8] sm:$0xff]
  %v52 = vld [vmem:[%s0 + $0x10] sm:$0xff]
  %v53 = vld [vmem:[%s0 + $0x18] sm:$0xff]
  %vm54 = vcmask 261120
  %v55 = vsel %vm54, %v50, 0.0
  %56 = vadd.xlane.f32.xlu0 %v55
  %v57 = vpop.xlane.xlu0 %56
  %v58 = vsel %vm54, %v51, 0.0
  %59 = vadd.xlane.f32.xlu0 %v58
  %v60 = vpop.xlane.xlu0 %59
  %v61 = vsel %vm54, %v52, 0.0
  %62 = vadd.xlane.f32.xlu0 %v61
  %v63 = vpop.xlane.xlu0 %62
  %v64 = vsel %vm54, %v53, 0.0
  %65 = vadd.xlane.f32.xlu0 %v64
  %v66 = vpop.xlane.xlu0 %65
  %v67 = vrcp.pop 32.0
  %v68 = vmul.f32 %v57, %v67
  %v69 = vmul.f32 %v60, %v67
  %v70 = vmul.f32 %v63, %v67
  %v71 = vmul.f32 %v66, %v67
  %v72 = vsub.f32 %v50, %v68
  %v73 = vsub.f32 %v51, %v69
  %v74 = vsub.f32 %v52, %v70
  %v75 = vsub.f32 %v53, %v71
  %v76 = vmul.f32 %v72, %v72
  %v77 = vmul.f32 %v73, %v73
  %v78 = vmul.f32 %v74, %v74
  %v79 = vmul.f32 %v75, %v75
  %v80 = vsel %vm54, %v76, 0.0
  %81 = vadd.xlane.f32.xlu0 %v80
  %v82 = vpop.xlane.xlu0 %81
  %v83 = vsel %vm54, %v77, 0.0
  %84 = vadd.xlane.f32.xlu0 %v83
  %v85 = vpop.xlane.xlu0 %84
  %v86 = vsel %vm54, %v78, 0.0
  %87 = vadd.xlane.f32.xlu0 %v86
  %v88 = vpop.xlane.xlu0 %87
  %v89 = vsel %vm54, %v79, 0.0
  %90 = vadd.xlane.f32.xlu0 %v89
  %v91 = vpop.xlane.xlu0 %90
  %v92 = vmul.f32 %v82, %v67
  %v93 = vmul.f32 %v85, %v67
  %v94 = vmul.f32 %v88, %v67
  %v95 = vmul.f32 %v91, %v67
  %v96 = vadd.f32 %v92, 1e-05
  %v97 = vadd.f32 %v93, 1e-05
  %v98 = vadd.f32 %v94, 1e-05
  %v99 = vadd.f32 %v95, 1e-05
  %v100 = vrsqrt.pop %v96
  %v101 = vrsqrt.pop %v97
  %v102 = vrsqrt.pop %v98
  %v103 = vrsqrt.pop %v99
  %v104 = vmul.f32 %v72, %v100
  %v105 = vmul.f32 %v73, %v101
  %v106 = vmul.f32 %v74, %v102
  %v107 = vmul.f32 %v75, %v103
  %v109 = vlaneseq
  %v110 = vshrl.u32 %v109, 7
  %v111 = vsub.s32 0, %v110
  %v112 = vrot.slane %v47, %v111
  %v114 = vmul.f32 %v104, %v112
  %v115 = vmul.f32 %v105, %v112
  %v116 = vmul.f32 %v106, %v112
  %v117 = vmul.f32 %v107, %v112
  %v119 = vlaneseq
  %v120 = vshrl.u32 %v119, 7
  %v121 = vsub.s32 0, %v120
  %v122 = vrot.slane %v48, %v121
  %v124 = vadd.f32 %v114, %v122
  %v125 = vadd.f32 %v115, %v122
  %v126 = vadd.f32 %v116, %v122
  %v127 = vadd.f32 %v117, %v122
  %v128 = vld [vmem:[%s1] sm:$0xff]
  %v129 = vld [vmem:[%s1 + $0x8] sm:$0xff]
  %v130 = vld [vmem:[%s1 + $0x10] sm:$0xff]
  %v131 = vld [vmem:[%s1 + $0x18] sm:$0xff]
  %v132 = vlaneseq
  %v133 = vshrl.u32 %v132, 7
  %v134 = vsub.s32 0, %v133
  %v135 = vrot.slane %v49, %v134
  %v137 = vsel %vm54, %v124, 0
  %v140 = vsel %vm54, %v125, 0
  %v143 = vsel %vm54, %v126, 0
  %v146 = vsel %vm54, %v127, 0
  %148 = vmatprep.subr.mxu0 0.0
  %149 = vmatpush1.msra.mxu0 0.0
  %150 = vmatprep.subr.mxu0 0.0
  %151 = vmatpush1.msra.mxu0 0.0
  %152 = vmatprep.subr.mxu0 0.0
  %153 = vmatpush1.msra.mxu0 0.0
  %154 = vmatprep.subr.mxu0 0.0
  %155 = vmatpush1.msra.mxu0 0.0
  %156 = vmatprep.subr.mxu0 0.0
  %157 = vmatpush1.msra.mxu0 0.0
  %158 = vmatprep.subr.mxu0 0.0
  %159 = vmatpush1.msra.mxu0 0.0
  %160 = vmatprep.subr.mxu0 0.0
  %161 = vmatpush1.msra.mxu0 0.0
  %162 = vmatprep.subr.mxu0 0.0
  %163 = vmatpush1.msra.mxu0 0.0
  %164 = vmatprep.subr.mxu0 0.0
  %165 = vmatpush1.msra.mxu0 0.0
  %166 = vmatprep.subr.mxu0 0.0
  %167 = vmatpush1.msra.mxu0 0.0
  %168 = vmatprep.subr.mxu0 0.0
  %169 = vmatpush1.msra.mxu0 0.0
  %170 = vmatprep.subr.mxu0 0.0
  %171 = vmatpush1.msra.mxu0 0.0
  %172 = vmatprep.subr.mxu0 0.0
  %173 = vmatpush1.msra.mxu0 %v131
  %174 = vmatprep.subr.mxu0 0.0
  %175 = vmatpush1.msra.mxu0 %v130
  %176 = vmatprep.subr.mxu0 0.0
  %177 = vmatpush1.msra.mxu0 %v129
  %178 = vmatprep.subr.mxu0 0.0
  %179 = vmatpush1.msra.mxu0 %v128
  %180 = vmatprep.subr.mxu0 0.0
  %181 = vmatpush2.msra.mxu0 0.0
  %182 = vmatprep.subr.mxu0 0.0
  %183 = vmatpush2.msra.mxu0 0.0
  %184 = vmatprep.subr.mxu0 0.0
  %185 = vmatpush2.msra.mxu0 0.0
  %186 = vmatprep.subr.mxu0 0.0
  %187 = vmatpush2.msra.mxu0 0.0
  %188 = vmatprep.subr.mxu0 0.0
  %189 = vmatpush2.msra.mxu0 0.0
  %190 = vmatprep.subr.mxu0 0.0
  %191 = vmatpush2.msra.mxu0 0.0
  %192 = vmatprep.subr.mxu0 0.0
  %193 = vmatpush2.msra.mxu0 0.0
  %194 = vmatprep.subr.mxu0 0.0
  %195 = vmatpush2.msra.mxu0 0.0
  %196 = vmatprep.subr.mxu0 0.0
  %197 = vmatpush2.msra.mxu0 0.0
  %198 = vmatprep.subr.mxu0 0.0
  %199 = vmatpush2.msra.mxu0 0.0
  %200 = vmatprep.subr.mxu0 0.0
  %201 = vmatpush2.msra.mxu0 0.0
  %202 = vmatprep.subr.mxu0 0.0
  %203 = vmatpush2.msra.mxu0 0.0
  %204 = vmatprep.subr.mxu0 0.0
  %205 = vmatpush2.msra.mxu0 0.0
  %206 = vmatprep.subr.mxu0 0.0
  %207 = vmatpush2.msra.mxu0 0.0
  %208 = vmatprep.subr.mxu0 0.0
  %209 = vmatpush2.msra.mxu0 0.0
  %210 = vmatprep.subr.mxu0 0.0
  %211 = vmatpush2.msra.mxu0 0.0
  %212 = vmatprep.mubr.f32.mxu0 0.0
  %213 = vmatmul.mubr.f32.gmra.mxu0 %v137
  %v214 = vpop.f32.mrf.mxu0
  %v215 = vadd.f32 %v135, %v214
  %v216 = vpop.f32.mrf.mxu0
  %217 = vmatprep.mubr.f32.mxu0 0.0
  %218 = vmatmul.mubr.f32.gmra.mxu0 %v140
  %v219 = vpop.f32.mrf.mxu0
  %v220 = vadd.f32 %v135, %v219
  %v221 = vpop.f32.mrf.mxu0
  %222 = vmatprep.mubr.f32.mxu0 0.0
  %223 = vmatmul.mubr.f32.gmra.mxu0 %v143
  %v224 = vpop.f32.mrf.mxu0
  %v225 = vadd.f32 %v135, %v224
  %v226 = vpop.f32.mrf.mxu0
  %227 = vmatprep.mubr.f32.mxu0 0.0
  %228 = vmatmul.mubr.f32.gmra.mxu0 %v146
  %v229 = vpop.f32.mrf.mxu0
  %v230 = vadd.f32 %v135, %v229
  %v231 = vpop.f32.mrf.mxu0
  %232 = vdwg.mxu0
  %v233 = vld [vmem:[%s2] sm:$0xff]
  %v234 = vld [vmem:[%s2 + $0x8] sm:$0xff]
  %v235 = vld [vmem:[%s2 + $0x10] sm:$0xff]
  %v236 = vld [vmem:[%s2 + $0x18] sm:$0xff]
  %v237 = vlaneseq
  %v238 = vshrl.u32 %v237, 7
  %v239 = vsub.s32 1, %v238
  %v240 = vrot.slane %v49, %v239
  %241 = vmatprep.subr.mxu0 0.0
  %242 = vmatpush1.msra.mxu0 0.0
  %243 = vmatprep.subr.mxu0 0.0
  %244 = vmatpush1.msra.mxu0 0.0
  %245 = vmatprep.subr.mxu0 0.0
  %246 = vmatpush1.msra.mxu0 0.0
  %247 = vmatprep.subr.mxu0 0.0
  %248 = vmatpush1.msra.mxu0 0.0
  %249 = vmatprep.subr.mxu0 0.0
  %250 = vmatpush1.msra.mxu0 0.0
  %251 = vmatprep.subr.mxu0 0.0
  %252 = vmatpush1.msra.mxu0 0.0
  %253 = vmatprep.subr.mxu0 0.0
  %254 = vmatpush1.msra.mxu0 0.0
  %255 = vmatprep.subr.mxu0 0.0
  %256 = vmatpush1.msra.mxu0 0.0
  %257 = vmatprep.subr.mxu0 0.0
  %258 = vmatpush1.msra.mxu0 0.0
  %259 = vmatprep.subr.mxu0 0.0
  %260 = vmatpush1.msra.mxu0 0.0
  %261 = vmatprep.subr.mxu0 0.0
  %262 = vmatpush1.msra.mxu0 0.0
  %263 = vmatprep.subr.mxu0 0.0
  %264 = vmatpush1.msra.mxu0 0.0
  %265 = vmatprep.subr.mxu0 0.0
  %266 = vmatpush1.msra.mxu0 %v236
  %267 = vmatprep.subr.mxu0 0.0
  %268 = vmatpush1.msra.mxu0 %v235
  %269 = vmatprep.subr.mxu0 0.0
  %270 = vmatpush1.msra.mxu0 %v234
  %271 = vmatprep.subr.mxu0 0.0
  %272 = vmatpush1.msra.mxu0 %v233
  %273 = vmatprep.subr.mxu0 0.0
  %274 = vmatpush2.msra.mxu0 0.0
  %275 = vmatprep.subr.mxu0 0.0
  %276 = vmatpush2.msra.mxu0 0.0
  %277 = vmatprep.subr.mxu0 0.0
  %278 = vmatpush2.msra.mxu0 0.0
  %279 = vmatprep.subr.mxu0 0.0
  %280 = vmatpush2.msra.mxu0 0.0
  %281 = vmatprep.subr.mxu0 0.0
  %282 = vmatpush2.msra.mxu0 0.0
  %283 = vmatprep.subr.mxu0 0.0
  %284 = vmatpush2.msra.mxu0 0.0
  %285 = vmatprep.subr.mxu0 0.0
  %286 = vmatpush2.msra.mxu0 0.0
  %287 = vmatprep.subr.mxu0 0.0
  %288 = vmatpush2.msra.mxu0 0.0
  %289 = vmatprep.subr.mxu0 0.0
  %290 = vmatpush2.msra.mxu0 0.0
  %291 = vmatprep.subr.mxu0 0.0
  %292 = vmatpush2.msra.mxu0 0.0
  %293 = vmatprep.subr.mxu0 0.0
  %294 = vmatpush2.msra.mxu0 0.0
  %295 = vmatprep.subr.mxu0 0.0
  %296 = vmatpush2.msra.mxu0 0.0
  %297 = vmatprep.subr.mxu0 0.0
  %298 = vmatpush2.msra.mxu0 0.0
  %299 = vmatprep.subr.mxu0 0.0
  %300 = vmatpush2.msra.mxu0 0.0
  %301 = vmatprep.subr.mxu0 0.0
  %302 = vmatpush2.msra.mxu0 0.0
  %303 = vmatprep.subr.mxu0 0.0
  %304 = vmatpush2.msra.mxu0 0.0
  %305 = vmatprep.mubr.f32.mxu0 0.0
  %306 = vmatmul.mubr.f32.gmra.mxu0 %v137
  %v307 = vpop.f32.mrf.mxu0
  %v308 = vadd.f32 %v240, %v307
  %v309 = vpop.f32.mrf.mxu0
  %310 = vmatprep.mubr.f32.mxu0 0.0
  %311 = vmatmul.mubr.f32.gmra.mxu0 %v140
  %v312 = vpop.f32.mrf.mxu0
  %v313 = vadd.f32 %v240, %v312
  %v314 = vpop.f32.mrf.mxu0
  %315 = vmatprep.mubr.f32.mxu0 0.0
  %316 = vmatmul.mubr.f32.gmra.mxu0 %v143
  %v317 = vpop.f32.mrf.mxu0
  %v318 = vadd.f32 %v240, %v317
  %v319 = vpop.f32.mrf.mxu0
  %320 = vmatprep.mubr.f32.mxu0 0.0
  %321 = vmatmul.mubr.f32.gmra.mxu0 %v146
  %v322 = vpop.f32.mrf.mxu0
  %v323 = vadd.f32 %v240, %v322
  %v324 = vpop.f32.mrf.mxu0
  %325 = vdwg.mxu0
  %v326 = vld [vmem:[%s3] sm:$0xff]
  %v327 = vld [vmem:[%s3 + $0x8] sm:$0xff]
  %v328 = vld [vmem:[%s3 + $0x10] sm:$0xff]
  %v329 = vld [vmem:[%s3 + $0x18] sm:$0xff]
  %v330 = vlaneseq
  %v331 = vshrl.u32 %v330, 7
  %v332 = vsub.s32 2, %v331
  %v333 = vrot.slane %v49, %v332
  %334 = vmatprep.subr.mxu0 0.0
  %335 = vmatpush1.msra.mxu0 0.0
  %336 = vmatprep.subr.mxu0 0.0
  %337 = vmatpush1.msra.mxu0 0.0
  %338 = vmatprep.subr.mxu0 0.0
  %339 = vmatpush1.msra.mxu0 0.0
  %340 = vmatprep.subr.mxu0 0.0
  %341 = vmatpush1.msra.mxu0 0.0
  %342 = vmatprep.subr.mxu0 0.0
  %343 = vmatpush1.msra.mxu0 0.0
  %344 = vmatprep.subr.mxu0 0.0
  %345 = vmatpush1.msra.mxu0 0.0
  %346 = vmatprep.subr.mxu0 0.0
  %347 = vmatpush1.msra.mxu0 0.0
  %348 = vmatprep.subr.mxu0 0.0
  %349 = vmatpush1.msra.mxu0 0.0
  %350 = vmatprep.subr.mxu0 0.0
  %351 = vmatpush1.msra.mxu0 0.0
  %352 = vmatprep.subr.mxu0 0.0
  %353 = vmatpush1.msra.mxu0 0.0
  %354 = vmatprep.subr.mxu0 0.0
  %355 = vmatpush1.msra.mxu0 0.0
  %356 = vmatprep.subr.mxu0 0.0
  %357 = vmatpush1.msra.mxu0 0.0
  %358 = vmatprep.subr.mxu0 0.0
  %359 = vmatpush1.msra.mxu0 %v329
  %360 = vmatprep.subr.mxu0 0.0
  %361 = vmatpush1.msra.mxu0 %v328
  %362 = vmatprep.subr.mxu0 0.0
  %363 = vmatpush1.msra.mxu0 %v327
  %364 = vmatprep.subr.mxu0 0.0
  %365 = vmatpush1.msra.mxu0 %v326
  %366 = vmatprep.subr.mxu0 0.0
  %367 = vmatpush2.msra.mxu0 0.0
  %368 = vmatprep.subr.mxu0 0.0
  %369 = vmatpush2.msra.mxu0 0.0
  %370 = vmatprep.subr.mxu0 0.0
  %371 = vmatpush2.msra.mxu0 0.0
  %372 = vmatprep.subr.mxu0 0.0
  %373 = vmatpush2.msra.mxu0 0.0
  %374 = vmatprep.subr.mxu0 0.0
  %375 = vmatpush2.msra.mxu0 0.0
  %376 = vmatprep.subr.mxu0 0.0
  %377 = vmatpush2.msra.mxu0 0.0
  %378 = vmatprep.subr.mxu0 0.0
  %379 = vmatpush2.msra.mxu0 0.0
  %380 = vmatprep.subr.mxu0 0.0
  %381 = vmatpush2.msra.mxu0 0.0
  %382 = vmatprep.subr.mxu0 0.0
  %383 = vmatpush2.msra.mxu0 0.0
  %384 = vmatprep.subr.mxu0 0.0
  %385 = vmatpush2.msra.mxu0 0.0
  %386 = vmatprep.subr.mxu0 0.0
  %387 = vmatpush2.msra.mxu0 0.0
  %388 = vmatprep.subr.mxu0 0.0
  %389 = vmatpush2.msra.mxu0 0.0
  %390 = vmatprep.subr.mxu0 0.0
  %391 = vmatpush2.msra.mxu0 0.0
  %392 = vmatprep.subr.mxu0 0.0
  %393 = vmatpush2.msra.mxu0 0.0
  %394 = vmatprep.subr.mxu0 0.0
  %395 = vmatpush2.msra.mxu0 0.0
  %396 = vmatprep.subr.mxu0 0.0
  %397 = vmatpush2.msra.mxu0 0.0
  %398 = vmatprep.mubr.f32.mxu0 0.0
  %399 = vmatmul.mubr.f32.gmra.mxu0 %v137
  %v400 = vpop.f32.mrf.mxu0
  %v401 = vadd.f32 %v333, %v400
  %v402 = vpop.f32.mrf.mxu0
  %403 = vmatprep.mubr.f32.mxu0 0.0
  %404 = vmatmul.mubr.f32.gmra.mxu0 %v140
  %v405 = vpop.f32.mrf.mxu0
  %v406 = vadd.f32 %v333, %v405
  %v407 = vpop.f32.mrf.mxu0
  %408 = vmatprep.mubr.f32.mxu0 0.0
  %409 = vmatmul.mubr.f32.gmra.mxu0 %v143
  %v410 = vpop.f32.mrf.mxu0
  %v411 = vadd.f32 %v333, %v410
  %v412 = vpop.f32.mrf.mxu0
  %413 = vmatprep.mubr.f32.mxu0 0.0
  %414 = vmatmul.mubr.f32.gmra.mxu0 %v146
  %v415 = vpop.f32.mrf.mxu0
  %v416 = vadd.f32 %v333, %v415
  %v417 = vpop.f32.mrf.mxu0
  %418 = vdwg.mxu0
  %v419 = vld [vmem:[%s10] sm:$0xff]
  %v420 = vld [vmem:[%s10 + $0x8] sm:$0xff]
  %v421 = vld [vmem:[%s10 + $0x10] sm:$0xff]
  %v422 = vld [vmem:[%s10 + $0x18] sm:$0xff]
  %v423 = vld [vmem:[%s10 + $0x20] sm:$0xff]
  %v424 = vld [vmem:[%s10 + $0x28] sm:$0xff]
  %v425 = vld [vmem:[%s10 + $0x30] sm:$0xff]
  %v426 = vld [vmem:[%s10 + $0x38] sm:$0xff]
  %v427 = vld [vmem:[%s10 + $0x40] sm:$0xff]
  %v428 = vld [vmem:[%s10 + $0x48] sm:$0xff]
  %v429 = vld [vmem:[%s10 + $0x50] sm:$0xff]
  %v430 = vld [vmem:[%s10 + $0x58] sm:$0xff]
  %v431 = vld [vmem:[%s10 + $0x60] sm:$0xff]
  %v432 = vld [vmem:[%s10 + $0x68] sm:$0xff]
  %v433 = vld [vmem:[%s10 + $0x70] sm:$0xff]
  %v434 = vld [vmem:[%s10 + $0x78] sm:$0xff]
  %v435 = vld [vmem:[%s10 + $0x80] sm:$0xff]
  %v436 = vld [vmem:[%s10 + $0x88] sm:$0xff]
  %v437 = vld [vmem:[%s10 + $0x90] sm:$0xff]
  %v438 = vld [vmem:[%s10 + $0x98] sm:$0xff]
  %v439 = vld [vmem:[%s10 + $0xa0] sm:$0xff]
  %v440 = vld [vmem:[%s10 + $0xa8] sm:$0xff]
  %v441 = vld [vmem:[%s10 + $0xb0] sm:$0xff]
  %v442 = vld [vmem:[%s10 + $0xb8] sm:$0xff]
  %v443 = vld [vmem:[%s10 + $0xc0] sm:$0xff]
  %v444 = vld [vmem:[%s10 + $0xc8] sm:$0xff]
  %v445 = vld [vmem:[%s10 + $0xd0] sm:$0xff]
  %v446 = vld [vmem:[%s10 + $0xd8] sm:$0xff]
  %v447 = vld [vmem:[%s10 + $0xe0] sm:$0xff]
  %v448 = vld [vmem:[%s10 + $0xe8] sm:$0xff]
  %v449 = vld [vmem:[%s10 + $0xf0] sm:$0xff]
  %v450 = vld [vmem:[%s10 + $0xf8] sm:$0xff]
  %v451 = vld [vmem:[%s10 + $0x100] sm:$0xff]
  %v452 = vld [vmem:[%s10 + $0x108] sm:$0xff]
  %v453 = vld [vmem:[%s10 + $0x110] sm:$0xff]
  %v454 = vld [vmem:[%s10 + $0x118] sm:$0xff]
  %v455 = vld [vmem:[%s10 + $0x120] sm:$0xff]
  %v456 = vld [vmem:[%s10 + $0x128] sm:$0xff]
  %v457 = vld [vmem:[%s10 + $0x130] sm:$0xff]
  %v458 = vld [vmem:[%s10 + $0x138] sm:$0xff]
  %v459 = vld [vmem:[%s10 + $0x140] sm:$0xff]
  %v460 = vld [vmem:[%s10 + $0x148] sm:$0xff]
  %v461 = vld [vmem:[%s10 + $0x150] sm:$0xff]
  %v462 = vld [vmem:[%s10 + $0x158] sm:$0xff]
  %v463 = vld [vmem:[%s10 + $0x160] sm:$0xff]
  %v464 = vld [vmem:[%s10 + $0x168] sm:$0xff]
  %v465 = vld [vmem:[%s10 + $0x170] sm:$0xff]
  %v466 = vld [vmem:[%s10 + $0x178] sm:$0xff]
  %v467 = vld [vmem:[%s10 + $0x180] sm:$0xff]
  %v468 = vld [vmem:[%s10 + $0x188] sm:$0xff]
  %v469 = vld [vmem:[%s10 + $0x190] sm:$0xff]
  %v470 = vld [vmem:[%s10 + $0x198] sm:$0xff]
  %v471 = vld [vmem:[%s10 + $0x1a0] sm:$0xff]
  %v472 = vld [vmem:[%s10 + $0x1a8] sm:$0xff]
  %v473 = vld [vmem:[%s10 + $0x1b0] sm:$0xff]
  %v474 = vld [vmem:[%s10 + $0x1b8] sm:$0xff]
  %v475 = vld [vmem:[%s10 + $0x1c0] sm:$0xff]
  %v476 = vld [vmem:[%s10 + $0x1c8] sm:$0xff]
  %v477 = vld [vmem:[%s10 + $0x1d0] sm:$0xff]
  %v478 = vld [vmem:[%s10 + $0x1d8] sm:$0xff]
  %v479 = vld [vmem:[%s10 + $0x1e0] sm:$0xff]
  %v480 = vld [vmem:[%s10 + $0x1e8] sm:$0xff]
  %v481 = vld [vmem:[%s10 + $0x1f0] sm:$0xff]
  %v482 = vld [vmem:[%s10 + $0x1f8] sm:$0xff]
  %v483 = vmul.f32 %v308, %v419
  %v484 = vmul.f32 %v313, %v420
  %v485 = vmul.f32 %v318, %v421
  %v486 = vmul.f32 %v323, %v422
  %v487 = vmul.f32 %v308, %v423
  %v488 = vmul.f32 %v313, %v424
  %v489 = vmul.f32 %v318, %v425
  %v490 = vmul.f32 %v323, %v426
  %v491 = vmul.f32 %v308, %v427
  %v492 = vmul.f32 %v313, %v428
  %v493 = vmul.f32 %v318, %v429
  %v494 = vmul.f32 %v323, %v430
  %v495 = vmul.f32 %v308, %v431
  %v496 = vmul.f32 %v313, %v432
  %v497 = vmul.f32 %v318, %v433
  %v498 = vmul.f32 %v323, %v434
  %v499 = vmul.f32 %v308, %v435
  %v500 = vmul.f32 %v313, %v436
  %v501 = vmul.f32 %v318, %v437
  %v502 = vmul.f32 %v323, %v438
  %v503 = vmul.f32 %v308, %v439
  %v504 = vmul.f32 %v313, %v440
  %v505 = vmul.f32 %v318, %v441
  %v506 = vmul.f32 %v323, %v442
  %v507 = vmul.f32 %v308, %v443
  %v508 = vmul.f32 %v313, %v444
  %v509 = vmul.f32 %v318, %v445
  %v510 = vmul.f32 %v323, %v446
  %v511 = vmul.f32 %v308, %v447
  %v512 = vmul.f32 %v313, %v448
  %v513 = vmul.f32 %v318, %v449
  %v514 = vmul.f32 %v323, %v450
  %v515 = vmul.f32 %v308, %v451
  %v516 = vmul.f32 %v313, %v452
  %v517 = vmul.f32 %v318, %v453
  %v518 = vmul.f32 %v323, %v454
  %v519 = vmul.f32 %v308, %v455
  %v520 = vmul.f32 %v313, %v456
  %v521 = vmul.f32 %v318, %v457
  %v522 = vmul.f32 %v323, %v458
  %v523 = vmul.f32 %v308, %v459
  %v524 = vmul.f32 %v313, %v460
  %v525 = vmul.f32 %v318, %v461
  %v526 = vmul.f32 %v323, %v462
  %v527 = vmul.f32 %v308, %v463
  %v528 = vmul.f32 %v313, %v464
  %v529 = vmul.f32 %v318, %v465
  %v530 = vmul.f32 %v323, %v466
  %v531 = vmul.f32 %v308, %v467
  %v532 = vmul.f32 %v313, %v468
  %v533 = vmul.f32 %v318, %v469
  %v534 = vmul.f32 %v323, %v470
  %v535 = vmul.f32 %v308, %v471
  %v536 = vmul.f32 %v313, %v472
  %v537 = vmul.f32 %v318, %v473
  %v538 = vmul.f32 %v323, %v474
  %v539 = vmul.f32 %v308, %v475
  %v540 = vmul.f32 %v313, %v476
  %v541 = vmul.f32 %v318, %v477
  %v542 = vmul.f32 %v323, %v478
  %v543 = vmul.f32 %v308, %v479
  %v544 = vmul.f32 %v313, %v480
  %v545 = vmul.f32 %v318, %v481
  %v546 = vmul.f32 %v323, %v482
  %v547 = vmul.f32 %v401, %v419
  %v548 = vmul.f32 %v406, %v420
  %v549 = vmul.f32 %v411, %v421
  %v550 = vmul.f32 %v416, %v422
  %v551 = vmul.f32 %v401, %v423
  %v552 = vmul.f32 %v406, %v424
  %v553 = vmul.f32 %v411, %v425
  %v554 = vmul.f32 %v416, %v426
  %v555 = vmul.f32 %v401, %v427
  %v556 = vmul.f32 %v406, %v428
  %v557 = vmul.f32 %v411, %v429
  %v558 = vmul.f32 %v416, %v430
  %v559 = vmul.f32 %v401, %v431
  %v560 = vmul.f32 %v406, %v432
  %v561 = vmul.f32 %v411, %v433
  %v562 = vmul.f32 %v416, %v434
  %v563 = vmul.f32 %v401, %v435
  %v564 = vmul.f32 %v406, %v436
  %v565 = vmul.f32 %v411, %v437
  %v566 = vmul.f32 %v416, %v438
  %v567 = vmul.f32 %v401, %v439
  %v568 = vmul.f32 %v406, %v440
  %v569 = vmul.f32 %v411, %v441
  %v570 = vmul.f32 %v416, %v442
  %v571 = vmul.f32 %v401, %v443
  %v572 = vmul.f32 %v406, %v444
  %v573 = vmul.f32 %v411, %v445
  %v574 = vmul.f32 %v416, %v446
  %v575 = vmul.f32 %v401, %v447
  %v576 = vmul.f32 %v406, %v448
  %v577 = vmul.f32 %v411, %v449
  %v578 = vmul.f32 %v416, %v450
  %v579 = vmul.f32 %v401, %v451
  %v580 = vmul.f32 %v406, %v452
  %v581 = vmul.f32 %v411, %v453
  %v582 = vmul.f32 %v416, %v454
  %v583 = vmul.f32 %v401, %v455
  %v584 = vmul.f32 %v406, %v456
  %v585 = vmul.f32 %v411, %v457
  %v586 = vmul.f32 %v416, %v458
  %v587 = vmul.f32 %v401, %v459
  %v588 = vmul.f32 %v406, %v460
  %v589 = vmul.f32 %v411, %v461
  %v590 = vmul.f32 %v416, %v462
  %v591 = vmul.f32 %v401, %v463
  %v592 = vmul.f32 %v406, %v464
  %v593 = vmul.f32 %v411, %v465
  %v594 = vmul.f32 %v416, %v466
  %v595 = vmul.f32 %v401, %v467
  %v596 = vmul.f32 %v406, %v468
  %v597 = vmul.f32 %v411, %v469
  %v598 = vmul.f32 %v416, %v470
  %v599 = vmul.f32 %v401, %v471
  %v600 = vmul.f32 %v406, %v472
  %v601 = vmul.f32 %v411, %v473
  %v602 = vmul.f32 %v416, %v474
  %v603 = vmul.f32 %v401, %v475
  %v604 = vmul.f32 %v406, %v476
  %v605 = vmul.f32 %v411, %v477
  %v606 = vmul.f32 %v416, %v478
  %v607 = vmul.f32 %v401, %v479
  %v608 = vmul.f32 %v406, %v480
  %v609 = vmul.f32 %v411, %v481
  %v610 = vmul.f32 %v416, %v482
  %v611 = vld [vmem:[%s11] sm:$0xff]
  %v612 = vld [vmem:[%s11 + $0x8] sm:$0xff]
  %v613 = vld [vmem:[%s11 + $0x10] sm:$0xff]
  %v614 = vld [vmem:[%s11 + $0x18] sm:$0xff]
  %v615 = vld [vmem:[%s11 + $0x20] sm:$0xff]
  %v616 = vld [vmem:[%s11 + $0x28] sm:$0xff]
  %v617 = vld [vmem:[%s11 + $0x30] sm:$0xff]
  %v618 = vld [vmem:[%s11 + $0x38] sm:$0xff]
  %v619 = vld [vmem:[%s11 + $0x40] sm:$0xff]
  %v620 = vld [vmem:[%s11 + $0x48] sm:$0xff]
  %v621 = vld [vmem:[%s11 + $0x50] sm:$0xff]
  %v622 = vld [vmem:[%s11 + $0x58] sm:$0xff]
  %v623 = vld [vmem:[%s11 + $0x60] sm:$0xff]
  %v624 = vld [vmem:[%s11 + $0x68] sm:$0xff]
  %v625 = vld [vmem:[%s11 + $0x70] sm:$0xff]
  %v626 = vld [vmem:[%s11 + $0x78] sm:$0xff]
  %v628 = vsel %vm54, %v215, 0
  %v631 = vsel %vm54, %v220, 0
  %v634 = vsel %vm54, %v225, 0
  %v637 = vsel %vm54, %v230, 0
  %v640 = vsel %vm54, %v483, 0
  %v643 = vsel %vm54, %v484, 0
  %v646 = vsel %vm54, %v485, 0
  %v649 = vsel %vm54, %v486, 0
  %v652 = vsel %vm54, %v487, 0
  %v655 = vsel %vm54, %v488, 0
  %v658 = vsel %vm54, %v489, 0
  %v661 = vsel %vm54, %v490, 0
  %v664 = vsel %vm54, %v491, 0
  %v667 = vsel %vm54, %v492, 0
  %v670 = vsel %vm54, %v493, 0
  %v673 = vsel %vm54, %v494, 0
  %v676 = vsel %vm54, %v495, 0
  %v679 = vsel %vm54, %v496, 0
  %v682 = vsel %vm54, %v497, 0
  %v685 = vsel %vm54, %v498, 0
  %v688 = vsel %vm54, %v499, 0
  %v691 = vsel %vm54, %v500, 0
  %v694 = vsel %vm54, %v501, 0
  %v697 = vsel %vm54, %v502, 0
  %v700 = vsel %vm54, %v503, 0
  %v703 = vsel %vm54, %v504, 0
  %v706 = vsel %vm54, %v505, 0
  %v709 = vsel %vm54, %v506, 0
  %v712 = vsel %vm54, %v507, 0
  %v715 = vsel %vm54, %v508, 0
  %v718 = vsel %vm54, %v509, 0
  %v721 = vsel %vm54, %v510, 0
  %v724 = vsel %vm54, %v511, 0
  %v727 = vsel %vm54, %v512, 0
  %v730 = vsel %vm54, %v513, 0
  %v733 = vsel %vm54, %v514, 0
  %v736 = vsel %vm54, %v515, 0
  %v739 = vsel %vm54, %v516, 0
  %v742 = vsel %vm54, %v517, 0
  %v745 = vsel %vm54, %v518, 0
  %v748 = vsel %vm54, %v519, 0
  %v751 = vsel %vm54, %v520, 0
  %v754 = vsel %vm54, %v521, 0
  %v757 = vsel %vm54, %v522, 0
  %v760 = vsel %vm54, %v523, 0
  %v763 = vsel %vm54, %v524, 0
  %v766 = vsel %vm54, %v525, 0
  %v769 = vsel %vm54, %v526, 0
  %v772 = vsel %vm54, %v527, 0
  %v775 = vsel %vm54, %v528, 0
  %v778 = vsel %vm54, %v529, 0
  %v781 = vsel %vm54, %v530, 0
  %v784 = vsel %vm54, %v531, 0
  %v787 = vsel %vm54, %v532, 0
  %v790 = vsel %vm54, %v533, 0
  %v793 = vsel %vm54, %v534, 0
  %v796 = vsel %vm54, %v535, 0
  %v799 = vsel %vm54, %v536, 0
  %v802 = vsel %vm54, %v537, 0
  %v805 = vsel %vm54, %v538, 0
  %v808 = vsel %vm54, %v539, 0
  %v811 = vsel %vm54, %v540, 0
  %v814 = vsel %vm54, %v541, 0
  %v817 = vsel %vm54, %v542, 0
  %v820 = vsel %vm54, %v543, 0
  %v823 = vsel %vm54, %v544, 0
  %v826 = vsel %vm54, %v545, 0
  %v829 = vsel %vm54, %v546, 0
  %831 = vmatprep.subr.mxu0 0.0
  %832 = vmatpush1.xpose.msra.mxu0 %v685
  %833 = vmatprep.subr.mxu0 0.0
  %834 = vmatpush1.xpose.msra.mxu0 %v682
  %835 = vmatprep.subr.mxu0 0.0
  %836 = vmatpush1.xpose.msra.mxu0 %v679
  %837 = vmatprep.subr.mxu0 0.0
  %838 = vmatpush1.xpose.msra.mxu0 %v676
  %839 = vmatprep.subr.mxu0 0.0
  %840 = vmatpush1.xpose.msra.mxu0 %v673
  %841 = vmatprep.subr.mxu0 0.0
  %842 = vmatpush1.xpose.msra.mxu0 %v670
  %843 = vmatprep.subr.mxu0 0.0
  %844 = vmatpush1.xpose.msra.mxu0 %v667
  %845 = vmatprep.subr.mxu0 0.0
  %846 = vmatpush1.xpose.msra.mxu0 %v664
  %847 = vmatprep.subr.mxu0 0.0
  %848 = vmatpush1.xpose.msra.mxu0 %v661
  %849 = vmatprep.subr.mxu0 0.0
  %850 = vmatpush1.xpose.msra.mxu0 %v658
  %851 = vmatprep.subr.mxu0 0.0
  %852 = vmatpush1.xpose.msra.mxu0 %v655
  %853 = vmatprep.subr.mxu0 0.0
  %854 = vmatpush1.xpose.msra.mxu0 %v652
  %855 = vmatprep.subr.mxu0 0.0
  %856 = vmatpush1.xpose.msra.mxu0 %v649
  %857 = vmatprep.subr.mxu0 0.0
  %858 = vmatpush1.xpose.msra.mxu0 %v646
  %859 = vmatprep.subr.mxu0 0.0
  %860 = vmatpush1.xpose.msra.mxu0 %v643
  %861 = vmatprep.subr.mxu0 0.0
  %862 = vmatpush1.xpose.msra.mxu0 %v640
  %863 = vmatprep.subr.mxu0 0.0
  %864 = vmatpush2.xpose.msra.mxu0 %v733
  %865 = vmatprep.subr.mxu0 0.0
  %866 = vmatpush2.xpose.msra.mxu0 %v730
  %867 = vmatprep.subr.mxu0 0.0
  %868 = vmatpush2.xpose.msra.mxu0 %v727
  %869 = vmatprep.subr.mxu0 0.0
  %870 = vmatpush2.xpose.msra.mxu0 %v724
  %871 = vmatprep.subr.mxu0 0.0
  %872 = vmatpush2.xpose.msra.mxu0 %v721
  %873 = vmatprep.subr.mxu0 0.0
  %874 = vmatpush2.xpose.msra.mxu0 %v718
  %875 = vmatprep.subr.mxu0 0.0
  %876 = vmatpush2.xpose.msra.mxu0 %v715
  %877 = vmatprep.subr.mxu0 0.0
  %878 = vmatpush2.xpose.msra.mxu0 %v712
  %879 = vmatprep.subr.mxu0 0.0
  %880 = vmatpush2.xpose.msra.mxu0 %v709
  %881 = vmatprep.subr.mxu0 0.0
  %882 = vmatpush2.xpose.msra.mxu0 %v706
  %883 = vmatprep.subr.mxu0 0.0
  %884 = vmatpush2.xpose.msra.mxu0 %v703
  %885 = vmatprep.subr.mxu0 0.0
  %886 = vmatpush2.xpose.msra.mxu0 %v700
  %887 = vmatprep.subr.mxu0 0.0
  %888 = vmatpush2.xpose.msra.mxu0 %v697
  %889 = vmatprep.subr.mxu0 0.0
  %890 = vmatpush2.xpose.msra.mxu0 %v694
  %891 = vmatprep.subr.mxu0 0.0
  %892 = vmatpush2.xpose.msra.mxu0 %v691
  %893 = vmatprep.subr.mxu0 0.0
  %894 = vmatpush2.xpose.msra.mxu0 %v688
  %895 = vmatprep.mubr.f32.mxu0 0.0
  %896 = vmatmul.mubr.f32.gmra.mxu0 %v628
  %v897 = vpop.f32.mrf.mxu0
  %v898 = vadd.f32 %v611, %v897
  %v899 = vpop.f32.mrf.mxu0
  %v900 = vadd.f32 %v612, %v899
  %901 = vmatprep.mubr.f32.mxu0 0.0
  %902 = vmatmul.mubr.f32.gmra.mxu0 %v631
  %v903 = vpop.f32.mrf.mxu0
  %v904 = vadd.f32 %v615, %v903
  %v905 = vpop.f32.mrf.mxu0
  %v906 = vadd.f32 %v616, %v905
  %907 = vmatprep.mubr.f32.mxu0 0.0
  %908 = vmatmul.mubr.f32.gmra.mxu0 %v634
  %v909 = vpop.f32.mrf.mxu0
  %v910 = vadd.f32 %v619, %v909
  %v911 = vpop.f32.mrf.mxu0
  %v912 = vadd.f32 %v620, %v911
  %913 = vmatprep.mubr.f32.mxu0 0.0
  %914 = vmatmul.mubr.f32.gmra.mxu0 %v637
  %v915 = vpop.f32.mrf.mxu0
  %v916 = vadd.f32 %v623, %v915
  %v917 = vpop.f32.mrf.mxu0
  %v918 = vadd.f32 %v624, %v917
  %919 = vdwg.mxu0
  %920 = vmatprep.subr.mxu0 0.0
  %921 = vmatpush1.xpose.msra.mxu0 %v781
  %922 = vmatprep.subr.mxu0 0.0
  %923 = vmatpush1.xpose.msra.mxu0 %v778
  %924 = vmatprep.subr.mxu0 0.0
  %925 = vmatpush1.xpose.msra.mxu0 %v775
  %926 = vmatprep.subr.mxu0 0.0
  %927 = vmatpush1.xpose.msra.mxu0 %v772
  %928 = vmatprep.subr.mxu0 0.0
  %929 = vmatpush1.xpose.msra.mxu0 %v769
  %930 = vmatprep.subr.mxu0 0.0
  %931 = vmatpush1.xpose.msra.mxu0 %v766
  %932 = vmatprep.subr.mxu0 0.0
  %933 = vmatpush1.xpose.msra.mxu0 %v763
  %934 = vmatprep.subr.mxu0 0.0
  %935 = vmatpush1.xpose.msra.mxu0 %v760
  %936 = vmatprep.subr.mxu0 0.0
  %937 = vmatpush1.xpose.msra.mxu0 %v757
  %938 = vmatprep.subr.mxu0 0.0
  %939 = vmatpush1.xpose.msra.mxu0 %v754
  %940 = vmatprep.subr.mxu0 0.0
  %941 = vmatpush1.xpose.msra.mxu0 %v751
  %942 = vmatprep.subr.mxu0 0.0
  %943 = vmatpush1.xpose.msra.mxu0 %v748
  %944 = vmatprep.subr.mxu0 0.0
  %945 = vmatpush1.xpose.msra.mxu0 %v745
  %946 = vmatprep.subr.mxu0 0.0
  %947 = vmatpush1.xpose.msra.mxu0 %v742
  %948 = vmatprep.subr.mxu0 0.0
  %949 = vmatpush1.xpose.msra.mxu0 %v739
  %950 = vmatprep.subr.mxu0 0.0
  %951 = vmatpush1.xpose.msra.mxu0 %v736
  %952 = vmatprep.subr.mxu0 0.0
  %953 = vmatpush2.xpose.msra.mxu0 %v829
  %954 = vmatprep.subr.mxu0 0.0
  %955 = vmatpush2.xpose.msra.mxu0 %v826
  %956 = vmatprep.subr.mxu0 0.0
  %957 = vmatpush2.xpose.msra.mxu0 %v823
  %958 = vmatprep.subr.mxu0 0.0
  %959 = vmatpush2.xpose.msra.mxu0 %v820
  %960 = vmatprep.subr.mxu0 0.0
  %961 = vmatpush2.xpose.msra.mxu0 %v817
  %962 = vmatprep.subr.mxu0 0.0
  %963 = vmatpush2.xpose.msra.mxu0 %v814
  %964 = vmatprep.subr.mxu0 0.0
  %965 = vmatpush2.xpose.msra.mxu0 %v811
  %966 = vmatprep.subr.mxu0 0.0
  %967 = vmatpush2.xpose.msra.mxu0 %v808
  %968 = vmatprep.subr.mxu0 0.0
  %969 = vmatpush2.xpose.msra.mxu0 %v805
  %970 = vmatprep.subr.mxu0 0.0
  %971 = vmatpush2.xpose.msra.mxu0 %v802
  %972 = vmatprep.subr.mxu0 0.0
  %973 = vmatpush2.xpose.msra.mxu0 %v799
  %974 = vmatprep.subr.mxu0 0.0
  %975 = vmatpush2.xpose.msra.mxu0 %v796
  %976 = vmatprep.subr.mxu0 0.0
  %977 = vmatpush2.xpose.msra.mxu0 %v793
  %978 = vmatprep.subr.mxu0 0.0
  %979 = vmatpush2.xpose.msra.mxu0 %v790
  %980 = vmatprep.subr.mxu0 0.0
  %981 = vmatpush2.xpose.msra.mxu0 %v787
  %982 = vmatprep.subr.mxu0 0.0
  %983 = vmatpush2.xpose.msra.mxu0 %v784
  %984 = vmatprep.mubr.f32.mxu0 0.0
  %985 = vmatmul.mubr.f32.gmra.mxu0 %v628
  %v986 = vpop.f32.mrf.mxu0
  %v987 = vadd.f32 %v613, %v986
  %v988 = vpop.f32.mrf.mxu0
  %v989 = vadd.f32 %v614, %v988
  %990 = vmatprep.mubr.f32.mxu0 0.0
  %991 = vmatmul.mubr.f32.gmra.mxu0 %v631
  %v992 = vpop.f32.mrf.mxu0
  %v993 = vadd.f32 %v617, %v992
  %v994 = vpop.f32.mrf.mxu0
  %v995 = vadd.f32 %v618, %v994
  %996 = vmatprep.mubr.f32.mxu0 0.0
  %997 = vmatmul.mubr.f32.gmra.mxu0 %v634
  %v998 = vpop.f32.mrf.mxu0
  %v999 = vadd.f32 %v621, %v998
  %v1000 = vpop.f32.mrf.mxu0
  %v1001 = vadd.f32 %v622, %v1000
  %1002 = vmatprep.mubr.f32.mxu0 0.0
  %1003 = vmatmul.mubr.f32.gmra.mxu0 %v637
  %v1004 = vpop.f32.mrf.mxu0
  %v1005 = vadd.f32 %v625, %v1004
  %v1006 = vpop.f32.mrf.mxu0
  %v1007 = vadd.f32 %v626, %v1006
  %1008 = vdwg.mxu0
  %v1009 = vmax.f32 %v898, %v900
  %v1010 = vmax.f32 %v1009, %v987
  %v1011 = vmax.f32 %v1010, %v989
  %1012 = vmax.xlane.f32.xlu0 %v1011
  %v1013 = vpop.xlane.xlu0 %1012
  %v1014 = vmax.f32 %v904, %v906
  %v1015 = vmax.f32 %v1014, %v993
  %v1016 = vmax.f32 %v1015, %v995
  %1017 = vmax.xlane.f32.xlu0 %v1016
  %v1018 = vpop.xlane.xlu0 %1017
  %v1019 = vmax.f32 %v910, %v912
  %v1020 = vmax.f32 %v1019, %v999
  %v1021 = vmax.f32 %v1020, %v1001
  %1022 = vmax.xlane.f32.xlu0 %v1021
  %v1023 = vpop.xlane.xlu0 %1022
  %v1024 = vmax.f32 %v916, %v918
  %v1025 = vmax.f32 %v1024, %v1005
  %v1026 = vmax.f32 %v1025, %v1007
  %1027 = vmax.xlane.f32.xlu0 %v1026
  %v1028 = vpop.xlane.xlu0 %1027
  %v1029 = vsub.f32 %v898, %v1013
  %v1030 = vsub.f32 %v900, %v1013
  %v1031 = vsub.f32 %v987, %v1013
  %v1032 = vsub.f32 %v989, %v1013
  %v1033 = vsub.f32 %v904, %v1018
  %v1034 = vsub.f32 %v906, %v1018
  %v1035 = vsub.f32 %v993, %v1018
  %v1036 = vsub.f32 %v995, %v1018
  %v1037 = vsub.f32 %v910, %v1023
  %v1038 = vsub.f32 %v912, %v1023
  %v1039 = vsub.f32 %v999, %v1023
  %v1040 = vsub.f32 %v1001, %v1023
  %v1041 = vsub.f32 %v916, %v1028
  %v1042 = vsub.f32 %v918, %v1028
  %v1043 = vsub.f32 %v1005, %v1028
  %v1044 = vsub.f32 %v1007, %v1028
  %v1045 = vmul.f32 %v1029, 1.442695
  %v1046 = vpow.pop %v1045
  %v1047 = vmul.f32 %v1030, 1.442695
  %v1048 = vpow.pop %v1047
  %v1049 = vmul.f32 %v1031, 1.442695
  %v1050 = vpow.pop %v1049
  %v1051 = vmul.f32 %v1032, 1.442695
  %v1052 = vpow.pop %v1051
  %v1053 = vmul.f32 %v1033, 1.442695
  %v1054 = vpow.pop %v1053
  %v1055 = vmul.f32 %v1034, 1.442695
  %v1056 = vpow.pop %v1055
  %v1057 = vmul.f32 %v1035, 1.442695
  %v1058 = vpow.pop %v1057
  %v1059 = vmul.f32 %v1036, 1.442695
  %v1060 = vpow.pop %v1059
  %v1061 = vmul.f32 %v1037, 1.442695
  %v1062 = vpow.pop %v1061
  %v1063 = vmul.f32 %v1038, 1.442695
  %v1064 = vpow.pop %v1063
  %v1065 = vmul.f32 %v1039, 1.442695
  %v1066 = vpow.pop %v1065
  %v1067 = vmul.f32 %v1040, 1.442695
  %v1068 = vpow.pop %v1067
  %v1069 = vmul.f32 %v1041, 1.442695
  %v1070 = vpow.pop %v1069
  %v1071 = vmul.f32 %v1042, 1.442695
  %v1072 = vpow.pop %v1071
  %v1073 = vmul.f32 %v1043, 1.442695
  %v1074 = vpow.pop %v1073
  %v1075 = vmul.f32 %v1044, 1.442695
  %v1076 = vpow.pop %v1075
  %v1077 = vld [vmem:[%s12] sm:$0xff]
  %v1078 = vld [vmem:[%s12 + $0x8] sm:$0xff]
  %v1079 = vld [vmem:[%s12 + $0x10] sm:$0xff]
  %v1080 = vld [vmem:[%s12 + $0x18] sm:$0xff]
  %v1081 = vld [vmem:[%s12 + $0x20] sm:$0xff]
  %v1082 = vld [vmem:[%s12 + $0x28] sm:$0xff]
  %v1083 = vld [vmem:[%s12 + $0x30] sm:$0xff]
  %v1084 = vld [vmem:[%s12 + $0x38] sm:$0xff]
  %v1085 = vld [vmem:[%s12 + $0x40] sm:$0xff]
  %v1086 = vld [vmem:[%s12 + $0x48] sm:$0xff]
  %v1087 = vld [vmem:[%s12 + $0x50] sm:$0xff]
  %v1088 = vld [vmem:[%s12 + $0x58] sm:$0xff]
  %v1089 = vld [vmem:[%s12 + $0x60] sm:$0xff]
  %v1090 = vld [vmem:[%s12 + $0x68] sm:$0xff]
  %v1091 = vld [vmem:[%s12 + $0x70] sm:$0xff]
  %v1092 = vld [vmem:[%s12 + $0x78] sm:$0xff]
  %v1093 = vld [vmem:[%s12 + $0x80] sm:$0xff]
  %v1094 = vld [vmem:[%s12 + $0x88] sm:$0xff]
  %v1095 = vld [vmem:[%s12 + $0x90] sm:$0xff]
  %v1096 = vld [vmem:[%s12 + $0x98] sm:$0xff]
  %v1097 = vld [vmem:[%s12 + $0xa0] sm:$0xff]
  %v1098 = vld [vmem:[%s12 + $0xa8] sm:$0xff]
  %v1099 = vld [vmem:[%s12 + $0xb0] sm:$0xff]
  %v1100 = vld [vmem:[%s12 + $0xb8] sm:$0xff]
  %v1101 = vld [vmem:[%s12 + $0xc0] sm:$0xff]
  %v1102 = vld [vmem:[%s12 + $0xc8] sm:$0xff]
  %v1103 = vld [vmem:[%s12 + $0xd0] sm:$0xff]
  %v1104 = vld [vmem:[%s12 + $0xd8] sm:$0xff]
  %v1105 = vld [vmem:[%s12 + $0xe0] sm:$0xff]
  %v1106 = vld [vmem:[%s12 + $0xe8] sm:$0xff]
  %v1107 = vld [vmem:[%s12 + $0xf0] sm:$0xff]
  %v1108 = vld [vmem:[%s12 + $0xf8] sm:$0xff]
  %v1109 = vld [vmem:[%s12 + $0x100] sm:$0xff]
  %v1110 = vld [vmem:[%s12 + $0x108] sm:$0xff]
  %v1111 = vld [vmem:[%s12 + $0x110] sm:$0xff]
  %v1112 = vld [vmem:[%s12 + $0x118] sm:$0xff]
  %v1113 = vld [vmem:[%s12 + $0x120] sm:$0xff]
  %v1114 = vld [vmem:[%s12 + $0x128] sm:$0xff]
  %v1115 = vld [vmem:[%s12 + $0x130] sm:$0xff]
  %v1116 = vld [vmem:[%s12 + $0x138] sm:$0xff]
  %v1117 = vld [vmem:[%s12 + $0x140] sm:$0xff]
  %v1118 = vld [vmem:[%s12 + $0x148] sm:$0xff]
  %v1119 = vld [vmem:[%s12 + $0x150] sm:$0xff]
  %v1120 = vld [vmem:[%s12 + $0x158] sm:$0xff]
  %v1121 = vld [vmem:[%s12 + $0x160] sm:$0xff]
  %v1122 = vld [vmem:[%s12 + $0x168] sm:$0xff]
  %v1123 = vld [vmem:[%s12 + $0x170] sm:$0xff]
  %v1124 = vld [vmem:[%s12 + $0x178] sm:$0xff]
  %v1125 = vld [vmem:[%s12 + $0x180] sm:$0xff]
  %v1126 = vld [vmem:[%s12 + $0x188] sm:$0xff]
  %v1127 = vld [vmem:[%s12 + $0x190] sm:$0xff]
  %v1128 = vld [vmem:[%s12 + $0x198] sm:$0xff]
  %v1129 = vld [vmem:[%s12 + $0x1a0] sm:$0xff]
  %v1130 = vld [vmem:[%s12 + $0x1a8] sm:$0xff]
  %v1131 = vld [vmem:[%s12 + $0x1b0] sm:$0xff]
  %v1132 = vld [vmem:[%s12 + $0x1b8] sm:$0xff]
  %v1133 = vld [vmem:[%s12 + $0x1c0] sm:$0xff]
  %v1134 = vld [vmem:[%s12 + $0x1c8] sm:$0xff]
  %v1135 = vld [vmem:[%s12 + $0x1d0] sm:$0xff]
  %v1136 = vld [vmem:[%s12 + $0x1d8] sm:$0xff]
  %v1137 = vld [vmem:[%s12 + $0x1e0] sm:$0xff]
  %v1138 = vld [vmem:[%s12 + $0x1e8] sm:$0xff]
  %v1139 = vld [vmem:[%s12 + $0x1f0] sm:$0xff]
  %v1140 = vld [vmem:[%s12 + $0x1f8] sm:$0xff]
  %1141 = vmatprep.subr.mxu0 0.0
  %1142 = vmatpush1.msra.mxu0 %v1092
  %1143 = vmatprep.subr.mxu0 0.0
  %1144 = vmatpush1.msra.mxu0 %v1091
  %1145 = vmatprep.subr.mxu0 0.0
  %1146 = vmatpush1.msra.mxu0 %v1090
  %1147 = vmatprep.subr.mxu0 0.0
  %1148 = vmatpush1.msra.mxu0 %v1089
  %1149 = vmatprep.subr.mxu0 0.0
  %1150 = vmatpush1.msra.mxu0 %v1088
  %1151 = vmatprep.subr.mxu0 0.0
  %1152 = vmatpush1.msra.mxu0 %v1087
  %1153 = vmatprep.subr.mxu0 0.0
  %1154 = vmatpush1.msra.mxu0 %v1086
  %1155 = vmatprep.subr.mxu0 0.0
  %1156 = vmatpush1.msra.mxu0 %v1085
  %1157 = vmatprep.subr.mxu0 0.0
  %1158 = vmatpush1.msra.mxu0 %v1084
  %1159 = vmatprep.subr.mxu0 0.0
  %1160 = vmatpush1.msra.mxu0 %v1083
  %1161 = vmatprep.subr.mxu0 0.0
  %1162 = vmatpush1.msra.mxu0 %v1082
  %1163 = vmatprep.subr.mxu0 0.0
  %1164 = vmatpush1.msra.mxu0 %v1081
  %1165 = vmatprep.subr.mxu0 0.0
  %1166 = vmatpush1.msra.mxu0 %v1080
  %1167 = vmatprep.subr.mxu0 0.0
  %1168 = vmatpush1.msra.mxu0 %v1079
  %1169 = vmatprep.subr.mxu0 0.0
  %1170 = vmatpush1.msra.mxu0 %v1078
  %1171 = vmatprep.subr.mxu0 0.0
  %1172 = vmatpush1.msra.mxu0 %v1077
  %1173 = vmatprep.subr.mxu0 0.0
  %1174 = vmatpush2.msra.mxu0 %v1108
  %1175 = vmatprep.subr.mxu0 0.0
  %1176 = vmatpush2.msra.mxu0 %v1107
  %1177 = vmatprep.subr.mxu0 0.0
  %1178 = vmatpush2.msra.mxu0 %v1106
  %1179 = vmatprep.subr.mxu0 0.0
  %1180 = vmatpush2.msra.mxu0 %v1105
  %1181 = vmatprep.subr.mxu0 0.0
  %1182 = vmatpush2.msra.mxu0 %v1104
  %1183 = vmatprep.subr.mxu0 0.0
  %1184 = vmatpush2.msra.mxu0 %v1103
  %1185 = vmatprep.subr.mxu0 0.0
  %1186 = vmatpush2.msra.mxu0 %v1102
  %1187 = vmatprep.subr.mxu0 0.0
  %1188 = vmatpush2.msra.mxu0 %v1101
  %1189 = vmatprep.subr.mxu0 0.0
  %1190 = vmatpush2.msra.mxu0 %v1100
  %1191 = vmatprep.subr.mxu0 0.0
  %1192 = vmatpush2.msra.mxu0 %v1099
  %1193 = vmatprep.subr.mxu0 0.0
  %1194 = vmatpush2.msra.mxu0 %v1098
  %1195 = vmatprep.subr.mxu0 0.0
  %1196 = vmatpush2.msra.mxu0 %v1097
  %1197 = vmatprep.subr.mxu0 0.0
  %1198 = vmatpush2.msra.mxu0 %v1096
  %1199 = vmatprep.subr.mxu0 0.0
  %1200 = vmatpush2.msra.mxu0 %v1095
  %1201 = vmatprep.subr.mxu0 0.0
  %1202 = vmatpush2.msra.mxu0 %v1094
  %1203 = vmatprep.subr.mxu0 0.0
  %1204 = vmatpush2.msra.mxu0 %v1093
  %1205 = vmatprep.mubr.f32.mxu0 %v1048
  %1206 = vmatmul.mubr.f32.gmra.mxu0 %v1046
  %v1207 = vpop.f32.mrf.mxu0
  %v1208 = vadd.f32 0.0, %v1207
  %v1209 = vpop.f32.mrf.mxu0
  %1210 = vmatprep.mubr.f32.mxu0 %v1056
  %1211 = vmatmul.mubr.f32.gmra.mxu0 %v1054
  %v1212 = vpop.f32.mrf.mxu0
  %v1213 = vadd.f32 0.0, %v1212
  %v1214 = vpop.f32.mrf.mxu0
  %1215 = vmatprep.mubr.f32.mxu0 %v1064
  %1216 = vmatmul.mubr.f32.gmra.mxu0 %v1062
  %v1217 = vpop.f32.mrf.mxu0
  %v1218 = vadd.f32 0.0, %v1217
  %v1219 = vpop.f32.mrf.mxu0
  %1220 = vmatprep.mubr.f32.mxu0 %v1072
  %1221 = vmatmul.mubr.f32.gmra.mxu0 %v1070
  %v1222 = vpop.f32.mrf.mxu0
  %v1223 = vadd.f32 0.0, %v1222
  %v1224 = vpop.f32.mrf.mxu0
  %1225 = vdwg.mxu0
  %1226 = vmatprep.subr.mxu0 0.0
  %1227 = vmatpush1.msra.mxu0 %v1124
  %1228 = vmatprep.subr.mxu0 0.0
  %1229 = vmatpush1.msra.mxu0 %v1123
  %1230 = vmatprep.subr.mxu0 0.0
  %1231 = vmatpush1.msra.mxu0 %v1122
  %1232 = vmatprep.subr.mxu0 0.0
  %1233 = vmatpush1.msra.mxu0 %v1121
  %1234 = vmatprep.subr.mxu0 0.0
  %1235 = vmatpush1.msra.mxu0 %v1120
  %1236 = vmatprep.subr.mxu0 0.0
  %1237 = vmatpush1.msra.mxu0 %v1119
  %1238 = vmatprep.subr.mxu0 0.0
  %1239 = vmatpush1.msra.mxu0 %v1118
  %1240 = vmatprep.subr.mxu0 0.0
  %1241 = vmatpush1.msra.mxu0 %v1117
  %1242 = vmatprep.subr.mxu0 0.0
  %1243 = vmatpush1.msra.mxu0 %v1116
  %1244 = vmatprep.subr.mxu0 0.0
  %1245 = vmatpush1.msra.mxu0 %v1115
  %1246 = vmatprep.subr.mxu0 0.0
  %1247 = vmatpush1.msra.mxu0 %v1114
  %1248 = vmatprep.subr.mxu0 0.0
  %1249 = vmatpush1.msra.mxu0 %v1113
  %1250 = vmatprep.subr.mxu0 0.0
  %1251 = vmatpush1.msra.mxu0 %v1112
  %1252 = vmatprep.subr.mxu0 0.0
  %1253 = vmatpush1.msra.mxu0 %v1111
  %1254 = vmatprep.subr.mxu0 0.0
  %1255 = vmatpush1.msra.mxu0 %v1110
  %1256 = vmatprep.subr.mxu0 0.0
  %1257 = vmatpush1.msra.mxu0 %v1109
  %1258 = vmatprep.subr.mxu0 0.0
  %1259 = vmatpush2.msra.mxu0 %v1140
  %1260 = vmatprep.subr.mxu0 0.0
  %1261 = vmatpush2.msra.mxu0 %v1139
  %1262 = vmatprep.subr.mxu0 0.0
  %1263 = vmatpush2.msra.mxu0 %v1138
  %1264 = vmatprep.subr.mxu0 0.0
  %1265 = vmatpush2.msra.mxu0 %v1137
  %1266 = vmatprep.subr.mxu0 0.0
  %1267 = vmatpush2.msra.mxu0 %v1136
  %1268 = vmatprep.subr.mxu0 0.0
  %1269 = vmatpush2.msra.mxu0 %v1135
  %1270 = vmatprep.subr.mxu0 0.0
  %1271 = vmatpush2.msra.mxu0 %v1134
  %1272 = vmatprep.subr.mxu0 0.0
  %1273 = vmatpush2.msra.mxu0 %v1133
  %1274 = vmatprep.subr.mxu0 0.0
  %1275 = vmatpush2.msra.mxu0 %v1132
  %1276 = vmatprep.subr.mxu0 0.0
  %1277 = vmatpush2.msra.mxu0 %v1131
  %1278 = vmatprep.subr.mxu0 0.0
  %1279 = vmatpush2.msra.mxu0 %v1130
  %1280 = vmatprep.subr.mxu0 0.0
  %1281 = vmatpush2.msra.mxu0 %v1129
  %1282 = vmatprep.subr.mxu0 0.0
  %1283 = vmatpush2.msra.mxu0 %v1128
  %1284 = vmatprep.subr.mxu0 0.0
  %1285 = vmatpush2.msra.mxu0 %v1127
  %1286 = vmatprep.subr.mxu0 0.0
  %1287 = vmatpush2.msra.mxu0 %v1126
  %1288 = vmatprep.subr.mxu0 0.0
  %1289 = vmatpush2.msra.mxu0 %v1125
  %1290 = vmatprep.mubr.f32.mxu0 %v1052
  %1291 = vmatmul.mubr.f32.gmra.mxu0 %v1050
  %v1292 = vpop.f32.mrf.mxu0
  %v1293 = vadd.f32 %v1208, %v1292
  %v1294 = vpop.f32.mrf.mxu0
  %1295 = vmatprep.mubr.f32.mxu0 %v1060
  %1296 = vmatmul.mubr.f32.gmra.mxu0 %v1058
  %v1297 = vpop.f32.mrf.mxu0
  %v1298 = vadd.f32 %v1213, %v1297
  %v1299 = vpop.f32.mrf.mxu0
  %1300 = vmatprep.mubr.f32.mxu0 %v1068
  %1301 = vmatmul.mubr.f32.gmra.mxu0 %v1066
  %v1302 = vpop.f32.mrf.mxu0
  %v1303 = vadd.f32 %v1218, %v1302
  %v1304 = vpop.f32.mrf.mxu0
  %1305 = vmatprep.mubr.f32.mxu0 %v1076
  %1306 = vmatmul.mubr.f32.gmra.mxu0 %v1074
  %v1307 = vpop.f32.mrf.mxu0
  %v1308 = vadd.f32 %v1223, %v1307
  %v1309 = vpop.f32.mrf.mxu0
  %1310 = vdwg.mxu0
  %v1311 = vmax.f32 %v1293, 1e-30
  %v1312 = vmax.f32 %v1298, 1e-30
  %v1313 = vmax.f32 %v1303, 1e-30
  %v1314 = vmax.f32 %v1308, 1e-30
  %v1315 = vrcp.pop %v1311
  %v1316 = vrcp.pop %v1312
  %v1317 = vrcp.pop %v1313
  %v1318 = vrcp.pop %v1314
  %v1319 = vmul.f32 %v1311, %v1315
  %v1320 = vmul.f32 %v1312, %v1316
  %v1321 = vmul.f32 %v1313, %v1317
  %v1322 = vmul.f32 %v1314, %v1318
  %v1323 = vsub.f32 2.0, %v1319
  %v1324 = vsub.f32 2.0, %v1320
  %v1325 = vsub.f32 2.0, %v1321
  %v1326 = vsub.f32 2.0, %v1322
  %v1327 = vmul.f32 %v1315, %v1323
  %v1328 = vmul.f32 %v1316, %v1324
  %v1329 = vmul.f32 %v1317, %v1325
  %v1330 = vmul.f32 %v1318, %v1326
  %1331 = vmatprep.subr.mxu0 0.0
  %1332 = vmatpush1.msra.mxu0 %v562
  %1333 = vmatprep.subr.mxu0 0.0
  %1334 = vmatpush1.msra.mxu0 %v561
  %1335 = vmatprep.subr.mxu0 0.0
  %1336 = vmatpush1.msra.mxu0 %v560
  %1337 = vmatprep.subr.mxu0 0.0
  %1338 = vmatpush1.msra.mxu0 %v559
  %1339 = vmatprep.subr.mxu0 0.0
  %1340 = vmatpush1.msra.mxu0 %v558
  %1341 = vmatprep.subr.mxu0 0.0
  %1342 = vmatpush1.msra.mxu0 %v557
  %1343 = vmatprep.subr.mxu0 0.0
  %1344 = vmatpush1.msra.mxu0 %v556
  %1345 = vmatprep.subr.mxu0 0.0
  %1346 = vmatpush1.msra.mxu0 %v555
  %1347 = vmatprep.subr.mxu0 0.0
  %1348 = vmatpush1.msra.mxu0 %v554
  %1349 = vmatprep.subr.mxu0 0.0
  %1350 = vmatpush1.msra.mxu0 %v553
  %1351 = vmatprep.subr.mxu0 0.0
  %1352 = vmatpush1.msra.mxu0 %v552
  %1353 = vmatprep.subr.mxu0 0.0
  %1354 = vmatpush1.msra.mxu0 %v551
  %1355 = vmatprep.subr.mxu0 0.0
  %1356 = vmatpush1.msra.mxu0 %v550
  %1357 = vmatprep.subr.mxu0 0.0
  %1358 = vmatpush1.msra.mxu0 %v549
  %1359 = vmatprep.subr.mxu0 0.0
  %1360 = vmatpush1.msra.mxu0 %v548
  %1361 = vmatprep.subr.mxu0 0.0
  %1362 = vmatpush1.msra.mxu0 %v547
  %1363 = vmatprep.subr.mxu0 0.0
  %1364 = vmatpush2.msra.mxu0 %v578
  %1365 = vmatprep.subr.mxu0 0.0
  %1366 = vmatpush2.msra.mxu0 %v577
  %1367 = vmatprep.subr.mxu0 0.0
  %1368 = vmatpush2.msra.mxu0 %v576
  %1369 = vmatprep.subr.mxu0 0.0
  %1370 = vmatpush2.msra.mxu0 %v575
  %1371 = vmatprep.subr.mxu0 0.0
  %1372 = vmatpush2.msra.mxu0 %v574
  %1373 = vmatprep.subr.mxu0 0.0
  %1374 = vmatpush2.msra.mxu0 %v573
  %1375 = vmatprep.subr.mxu0 0.0
  %1376 = vmatpush2.msra.mxu0 %v572
  %1377 = vmatprep.subr.mxu0 0.0
  %1378 = vmatpush2.msra.mxu0 %v571
  %1379 = vmatprep.subr.mxu0 0.0
  %1380 = vmatpush2.msra.mxu0 %v570
  %1381 = vmatprep.subr.mxu0 0.0
  %1382 = vmatpush2.msra.mxu0 %v569
  %1383 = vmatprep.subr.mxu0 0.0
  %1384 = vmatpush2.msra.mxu0 %v568
  %1385 = vmatprep.subr.mxu0 0.0
  %1386 = vmatpush2.msra.mxu0 %v567
  %1387 = vmatprep.subr.mxu0 0.0
  %1388 = vmatpush2.msra.mxu0 %v566
  %1389 = vmatprep.subr.mxu0 0.0
  %1390 = vmatpush2.msra.mxu0 %v565
  %1391 = vmatprep.subr.mxu0 0.0
  %1392 = vmatpush2.msra.mxu0 %v564
  %1393 = vmatprep.subr.mxu0 0.0
  %1394 = vmatpush2.msra.mxu0 %v563
  %1395 = vmatprep.mubr.f32.mxu0 %v1048
  %1396 = vmatmul.mubr.f32.gmra.mxu0 %v1046
  %v1397 = vpop.f32.mrf.mxu0
  %v1398 = vadd.f32 0.0, %v1397
  %v1399 = vpop.f32.mrf.mxu0
  %1400 = vmatprep.mubr.f32.mxu0 %v1056
  %1401 = vmatmul.mubr.f32.gmra.mxu0 %v1054
  %v1402 = vpop.f32.mrf.mxu0
  %v1403 = vadd.f32 0.0, %v1402
  %v1404 = vpop.f32.mrf.mxu0
  %1405 = vmatprep.mubr.f32.mxu0 %v1064
  %1406 = vmatmul.mubr.f32.gmra.mxu0 %v1062
  %v1407 = vpop.f32.mrf.mxu0
  %v1408 = vadd.f32 0.0, %v1407
  %v1409 = vpop.f32.mrf.mxu0
  %1410 = vmatprep.mubr.f32.mxu0 %v1072
  %1411 = vmatmul.mubr.f32.gmra.mxu0 %v1070
  %v1412 = vpop.f32.mrf.mxu0
  %v1413 = vadd.f32 0.0, %v1412
  %v1414 = vpop.f32.mrf.mxu0
  %1415 = vdwg.mxu0
  %1416 = vmatprep.subr.mxu0 0.0
  %1417 = vmatpush1.msra.mxu0 %v594
  %1418 = vmatprep.subr.mxu0 0.0
  %1419 = vmatpush1.msra.mxu0 %v593
  %1420 = vmatprep.subr.mxu0 0.0
  %1421 = vmatpush1.msra.mxu0 %v592
  %1422 = vmatprep.subr.mxu0 0.0
  %1423 = vmatpush1.msra.mxu0 %v591
  %1424 = vmatprep.subr.mxu0 0.0
  %1425 = vmatpush1.msra.mxu0 %v590
  %1426 = vmatprep.subr.mxu0 0.0
  %1427 = vmatpush1.msra.mxu0 %v589
  %1428 = vmatprep.subr.mxu0 0.0
  %1429 = vmatpush1.msra.mxu0 %v588
  %1430 = vmatprep.subr.mxu0 0.0
  %1431 = vmatpush1.msra.mxu0 %v587
  %1432 = vmatprep.subr.mxu0 0.0
  %1433 = vmatpush1.msra.mxu0 %v586
  %1434 = vmatprep.subr.mxu0 0.0
  %1435 = vmatpush1.msra.mxu0 %v585
  %1436 = vmatprep.subr.mxu0 0.0
  %1437 = vmatpush1.msra.mxu0 %v584
  %1438 = vmatprep.subr.mxu0 0.0
  %1439 = vmatpush1.msra.mxu0 %v583
  %1440 = vmatprep.subr.mxu0 0.0
  %1441 = vmatpush1.msra.mxu0 %v582
  %1442 = vmatprep.subr.mxu0 0.0
  %1443 = vmatpush1.msra.mxu0 %v581
  %1444 = vmatprep.subr.mxu0 0.0
  %1445 = vmatpush1.msra.mxu0 %v580
  %1446 = vmatprep.subr.mxu0 0.0
  %1447 = vmatpush1.msra.mxu0 %v579
  %1448 = vmatprep.subr.mxu0 0.0
  %1449 = vmatpush2.msra.mxu0 %v610
  %1450 = vmatprep.subr.mxu0 0.0
  %1451 = vmatpush2.msra.mxu0 %v609
  %1452 = vmatprep.subr.mxu0 0.0
  %1453 = vmatpush2.msra.mxu0 %v608
  %1454 = vmatprep.subr.mxu0 0.0
  %1455 = vmatpush2.msra.mxu0 %v607
  %1456 = vmatprep.subr.mxu0 0.0
  %1457 = vmatpush2.msra.mxu0 %v606
  %1458 = vmatprep.subr.mxu0 0.0
  %1459 = vmatpush2.msra.mxu0 %v605
  %1460 = vmatprep.subr.mxu0 0.0
  %1461 = vmatpush2.msra.mxu0 %v604
  %1462 = vmatprep.subr.mxu0 0.0
  %1463 = vmatpush2.msra.mxu0 %v603
  %1464 = vmatprep.subr.mxu0 0.0
  %1465 = vmatpush2.msra.mxu0 %v602
  %1466 = vmatprep.subr.mxu0 0.0
  %1467 = vmatpush2.msra.mxu0 %v601
  %1468 = vmatprep.subr.mxu0 0.0
  %1469 = vmatpush2.msra.mxu0 %v600
  %1470 = vmatprep.subr.mxu0 0.0
  %1471 = vmatpush2.msra.mxu0 %v599
  %1472 = vmatprep.subr.mxu0 0.0
  %1473 = vmatpush2.msra.mxu0 %v598
  %1474 = vmatprep.subr.mxu0 0.0
  %1475 = vmatpush2.msra.mxu0 %v597
  %1476 = vmatprep.subr.mxu0 0.0
  %1477 = vmatpush2.msra.mxu0 %v596
  %1478 = vmatprep.subr.mxu0 0.0
  %1479 = vmatpush2.msra.mxu0 %v595
  %1480 = vmatprep.mubr.f32.mxu0 %v1052
  %1481 = vmatmul.mubr.f32.gmra.mxu0 %v1050
  %v1482 = vpop.f32.mrf.mxu0
  %v1483 = vadd.f32 %v1398, %v1482
  %v1484 = vpop.f32.mrf.mxu0
  %1485 = vmatprep.mubr.f32.mxu0 %v1060
  %1486 = vmatmul.mubr.f32.gmra.mxu0 %v1058
  %v1487 = vpop.f32.mrf.mxu0
  %v1488 = vadd.f32 %v1403, %v1487
  %v1489 = vpop.f32.mrf.mxu0
  %1490 = vmatprep.mubr.f32.mxu0 %v1068
  %1491 = vmatmul.mubr.f32.gmra.mxu0 %v1066
  %v1492 = vpop.f32.mrf.mxu0
  %v1493 = vadd.f32 %v1408, %v1492
  %v1494 = vpop.f32.mrf.mxu0
  %1495 = vmatprep.mubr.f32.mxu0 %v1076
  %1496 = vmatmul.mubr.f32.gmra.mxu0 %v1074
  %v1497 = vpop.f32.mrf.mxu0
  %v1498 = vadd.f32 %v1413, %v1497
  %v1499 = vpop.f32.mrf.mxu0
  %1500 = vdwg.mxu0
  %v1501 = vld [vmem:[%s13] sm:$0xff]
  %v1502 = vld [vmem:[%s13 + $0x8] sm:$0xff]
  %vm1503 = vcmask 130048
  %v1505 = vsel %vm1503, %v1327, 0
  %v1508 = vsel %vm1503, %v1328, 0
  %v1511 = vsel %vm1503, %v1329, 0
  %v1514 = vsel %vm1503, %v1330, 0
  %1516 = vmatprep.subr.mxu0 0.0
  %1517 = vmatpush1.msra.mxu0 0.0
  %1518 = vmatprep.subr.mxu0 0.0
  %1519 = vmatpush1.msra.mxu0 0.0
  %1520 = vmatprep.subr.mxu0 0.0
  %1521 = vmatpush1.msra.mxu0 0.0
  %1522 = vmatprep.subr.mxu0 0.0
  %1523 = vmatpush1.msra.mxu0 0.0
  %1524 = vmatprep.subr.mxu0 0.0
  %1525 = vmatpush1.msra.mxu0 0.0
  %1526 = vmatprep.subr.mxu0 0.0
  %1527 = vmatpush1.msra.mxu0 0.0
  %1528 = vmatprep.subr.mxu0 0.0
  %1529 = vmatpush1.msra.mxu0 0.0
  %1530 = vmatprep.subr.mxu0 0.0
  %1531 = vmatpush1.msra.mxu0 0.0
  %1532 = vmatprep.subr.mxu0 0.0
  %1533 = vmatpush1.msra.mxu0 0.0
  %1534 = vmatprep.subr.mxu0 0.0
  %1535 = vmatpush1.msra.mxu0 0.0
  %1536 = vmatprep.subr.mxu0 0.0
  %1537 = vmatpush1.msra.mxu0 0.0
  %1538 = vmatprep.subr.mxu0 0.0
  %1539 = vmatpush1.msra.mxu0 0.0
  %1540 = vmatprep.subr.mxu0 0.0
  %1541 = vmatpush1.msra.mxu0 0.0
  %1542 = vmatprep.subr.mxu0 0.0
  %1543 = vmatpush1.msra.mxu0 0.0
  %1544 = vmatprep.subr.mxu0 0.0
  %1545 = vmatpush1.msra.mxu0 %v1502
  %1546 = vmatprep.subr.mxu0 0.0
  %1547 = vmatpush1.msra.mxu0 %v1501
  %1548 = vmatprep.subr.mxu0 0.0
  %1549 = vmatpush2.msra.mxu0 0.0
  %1550 = vmatprep.subr.mxu0 0.0
  %1551 = vmatpush2.msra.mxu0 0.0
  %1552 = vmatprep.subr.mxu0 0.0
  %1553 = vmatpush2.msra.mxu0 0.0
  %1554 = vmatprep.subr.mxu0 0.0
  %1555 = vmatpush2.msra.mxu0 0.0
  %1556 = vmatprep.subr.mxu0 0.0
  %1557 = vmatpush2.msra.mxu0 0.0
  %1558 = vmatprep.subr.mxu0 0.0
  %1559 = vmatpush2.msra.mxu0 0.0
  %1560 = vmatprep.subr.mxu0 0.0
  %1561 = vmatpush2.msra.mxu0 0.0
  %1562 = vmatprep.subr.mxu0 0.0
  %1563 = vmatpush2.msra.mxu0 0.0
  %1564 = vmatprep.subr.mxu0 0.0
  %1565 = vmatpush2.msra.mxu0 0.0
  %1566 = vmatprep.subr.mxu0 0.0
  %1567 = vmatpush2.msra.mxu0 0.0
  %1568 = vmatprep.subr.mxu0 0.0
  %1569 = vmatpush2.msra.mxu0 0.0
  %1570 = vmatprep.subr.mxu0 0.0
  %1571 = vmatpush2.msra.mxu0 0.0
  %1572 = vmatprep.subr.mxu0 0.0
  %1573 = vmatpush2.msra.mxu0 0.0
  %1574 = vmatprep.subr.mxu0 0.0
  %1575 = vmatpush2.msra.mxu0 0.0
  %1576 = vmatprep.subr.mxu0 0.0
  %1577 = vmatpush2.msra.mxu0 0.0
  %1578 = vmatprep.subr.mxu0 0.0
  %1579 = vmatpush2.msra.mxu0 0.0
  %1580 = vmatprep.mubr.f32.mxu0 0.0
  %1581 = vmatmul.mubr.f32.gmra.mxu0 %v1505
  %v1582 = vpop.f32.mrf.mxu0
  %v1583 = vadd.f32 0.0, %v1582
  %v1584 = vpop.f32.mrf.mxu0
  %1585 = vmatprep.mubr.f32.mxu0 0.0
  %1586 = vmatmul.mubr.f32.gmra.mxu0 %v1508
  %v1587 = vpop.f32.mrf.mxu0
  %v1588 = vadd.f32 0.0, %v1587
  %v1589 = vpop.f32.mrf.mxu0
  %1590 = vmatprep.mubr.f32.mxu0 0.0
  %1591 = vmatmul.mubr.f32.gmra.mxu0 %v1511
  %v1592 = vpop.f32.mrf.mxu0
  %v1593 = vadd.f32 0.0, %v1592
  %v1594 = vpop.f32.mrf.mxu0
  %1595 = vmatprep.mubr.f32.mxu0 0.0
  %1596 = vmatmul.mubr.f32.gmra.mxu0 %v1514
  %v1597 = vpop.f32.mrf.mxu0
  %v1598 = vadd.f32 0.0, %v1597
  %v1599 = vpop.f32.mrf.mxu0
  %1600 = vdwg.mxu0
  %v1601 = vmul.f32 %v1483, %v1583
  %v1602 = vmul.f32 %v1488, %v1588
  %v1603 = vmul.f32 %v1493, %v1593
  %v1604 = vmul.f32 %v1498, %v1598
  %v1605 = vld [vmem:[%s5] sm:$0xff]
  %v1606 = vld [vmem:[%s5 + $0x8] sm:$0xff]
  %v1607 = vld [vmem:[%s5 + $0x10] sm:$0xff]
  %v1608 = vld [vmem:[%s5 + $0x18] sm:$0xff]
  %v1609 = vld [vmem:[%s6] sm:$0x1]
  %v1611 = vlaneseq
  %v1612 = vshrl.u32 %v1611, 7
  %v1613 = vsub.s32 0, %v1612
  %v1614 = vrot.slane %v1609, %v1613
  %v1617 = vsel %vm54, %v1601, 0
  %v1620 = vsel %vm54, %v1602, 0
  %v1623 = vsel %vm54, %v1603, 0
  %v1626 = vsel %vm54, %v1604, 0
  %1628 = vmatprep.subr.mxu0 0.0
  %1629 = vmatpush1.msra.mxu0 0.0
  %1630 = vmatprep.subr.mxu0 0.0
  %1631 = vmatpush1.msra.mxu0 0.0
  %1632 = vmatprep.subr.mxu0 0.0
  %1633 = vmatpush1.msra.mxu0 0.0
  %1634 = vmatprep.subr.mxu0 0.0
  %1635 = vmatpush1.msra.mxu0 0.0
  %1636 = vmatprep.subr.mxu0 0.0
  %1637 = vmatpush1.msra.mxu0 0.0
  %1638 = vmatprep.subr.mxu0 0.0
  %1639 = vmatpush1.msra.mxu0 0.0
  %1640 = vmatprep.subr.mxu0 0.0
  %1641 = vmatpush1.msra.mxu0 0.0
  %1642 = vmatprep.subr.mxu0 0.0
  %1643 = vmatpush1.msra.mxu0 0.0
  %1644 = vmatprep.subr.mxu0 0.0
  %1645 = vmatpush1.msra.mxu0 0.0
  %1646 = vmatprep.subr.mxu0 0.0
  %1647 = vmatpush1.msra.mxu0 0.0
  %1648 = vmatprep.subr.mxu0 0.0
  %1649 = vmatpush1.msra.mxu0 0.0
  %1650 = vmatprep.subr.mxu0 0.0
  %1651 = vmatpush1.msra.mxu0 0.0
  %1652 = vmatprep.subr.mxu0 0.0
  %1653 = vmatpush1.msra.mxu0 %v1608
  %1654 = vmatprep.subr.mxu0 0.0
  %1655 = vmatpush1.msra.mxu0 %v1607
  %1656 = vmatprep.subr.mxu0 0.0
  %1657 = vmatpush1.msra.mxu0 %v1606
  %1658 = vmatprep.subr.mxu0 0.0
  %1659 = vmatpush1.msra.mxu0 %v1605
  %1660 = vmatprep.subr.mxu0 0.0
  %1661 = vmatpush2.msra.mxu0 0.0
  %1662 = vmatprep.subr.mxu0 0.0
  %1663 = vmatpush2.msra.mxu0 0.0
  %1664 = vmatprep.subr.mxu0 0.0
  %1665 = vmatpush2.msra.mxu0 0.0
  %1666 = vmatprep.subr.mxu0 0.0
  %1667 = vmatpush2.msra.mxu0 0.0
  %1668 = vmatprep.subr.mxu0 0.0
  %1669 = vmatpush2.msra.mxu0 0.0
  %1670 = vmatprep.subr.mxu0 0.0
  %1671 = vmatpush2.msra.mxu0 0.0
  %1672 = vmatprep.subr.mxu0 0.0
  %1673 = vmatpush2.msra.mxu0 0.0
  %1674 = vmatprep.subr.mxu0 0.0
  %1675 = vmatpush2.msra.mxu0 0.0
  %1676 = vmatprep.subr.mxu0 0.0
  %1677 = vmatpush2.msra.mxu0 0.0
  %1678 = vmatprep.subr.mxu0 0.0
  %1679 = vmatpush2.msra.mxu0 0.0
  %1680 = vmatprep.subr.mxu0 0.0
  %1681 = vmatpush2.msra.mxu0 0.0
  %1682 = vmatprep.subr.mxu0 0.0
  %1683 = vmatpush2.msra.mxu0 0.0
  %1684 = vmatprep.subr.mxu0 0.0
  %1685 = vmatpush2.msra.mxu0 0.0
  %1686 = vmatprep.subr.mxu0 0.0
  %1687 = vmatpush2.msra.mxu0 0.0
  %1688 = vmatprep.subr.mxu0 0.0
  %1689 = vmatpush2.msra.mxu0 0.0
  %1690 = vmatprep.subr.mxu0 0.0
  %1691 = vmatpush2.msra.mxu0 0.0
  %1692 = vmatprep.mubr.f32.mxu0 0.0
  %1693 = vmatmul.mubr.f32.gmra.mxu0 %v1617
  %v1694 = vpop.f32.mrf.mxu0
  %v1695 = vadd.f32 %v1614, %v1694
  %v1696 = vpop.f32.mrf.mxu0
  %1697 = vmatprep.mubr.f32.mxu0 0.0
  %1698 = vmatmul.mubr.f32.gmra.mxu0 %v1620
  %v1699 = vpop.f32.mrf.mxu0
  %v1700 = vadd.f32 %v1614, %v1699
  %v1701 = vpop.f32.mrf.mxu0
  %1702 = vmatprep.mubr.f32.mxu0 0.0
  %1703 = vmatmul.mubr.f32.gmra.mxu0 %v1623
  %v1704 = vpop.f32.mrf.mxu0
  %v1705 = vadd.f32 %v1614, %v1704
  %v1706 = vpop.f32.mrf.mxu0
  %1707 = vmatprep.mubr.f32.mxu0 0.0
  %1708 = vmatmul.mubr.f32.gmra.mxu0 %v1626
  %v1709 = vpop.f32.mrf.mxu0
  %v1710 = vadd.f32 %v1614, %v1709
  %v1711 = vpop.f32.mrf.mxu0
  %1712 = vdwg.mxu0
  %v1713 = vadd.f32 %v1695, %v124
  %v1714 = vadd.f32 %v1700, %v125
  %v1715 = vadd.f32 %v1705, %v126
  %v1716 = vadd.f32 %v1710, %v127
  %v1717 = vsel %vm54, %v1713, 0.0
  %1718 = vadd.xlane.f32.xlu0 %v1717
  %v1719 = vpop.xlane.xlu0 %1718
  %v1720 = vsel %vm54, %v1714, 0.0
  %1721 = vadd.xlane.f32.xlu0 %v1720
  %v1722 = vpop.xlane.xlu0 %1721
  %v1723 = vsel %vm54, %v1715, 0.0
  %1724 = vadd.xlane.f32.xlu0 %v1723
  %v1725 = vpop.xlane.xlu0 %1724
  %v1726 = vsel %vm54, %v1716, 0.0
  %1727 = vadd.xlane.f32.xlu0 %v1726
  %v1728 = vpop.xlane.xlu0 %1727
  %v1729 = vmul.f32 %v1719, %v67
  %v1730 = vmul.f32 %v1722, %v67
  %v1731 = vmul.f32 %v1725, %v67
  %v1732 = vmul.f32 %v1728, %v67
  %v1733 = vsub.f32 %v1713, %v1729
  %v1734 = vsub.f32 %v1714, %v1730
  %v1735 = vsub.f32 %v1715, %v1731
  %v1736 = vsub.f32 %v1716, %v1732
  %v1737 = vmul.f32 %v1733, %v1733
  %v1738 = vmul.f32 %v1734, %v1734
  %v1739 = vmul.f32 %v1735, %v1735
  %v1740 = vmul.f32 %v1736, %v1736
  %v1741 = vsel %vm54, %v1737, 0.0
  %1742 = vadd.xlane.f32.xlu0 %v1741
  %v1743 = vpop.xlane.xlu0 %1742
  %v1744 = vsel %vm54, %v1738, 0.0
  %1745 = vadd.xlane.f32.xlu0 %v1744
  %v1746 = vpop.xlane.xlu0 %1745
  %v1747 = vsel %vm54, %v1739, 0.0
  %1748 = vadd.xlane.f32.xlu0 %v1747
  %v1749 = vpop.xlane.xlu0 %1748
  %v1750 = vsel %vm54, %v1740, 0.0
  %1751 = vadd.xlane.f32.xlu0 %v1750
  %v1752 = vpop.xlane.xlu0 %1751
  %v1753 = vmul.f32 %v1743, %v67
  %v1754 = vmul.f32 %v1746, %v67
  %v1755 = vmul.f32 %v1749, %v67
  %v1756 = vmul.f32 %v1752, %v67
  %v1757 = vadd.f32 %v1753, 1e-05
  %v1758 = vadd.f32 %v1754, 1e-05
  %v1759 = vadd.f32 %v1755, 1e-05
  %v1760 = vadd.f32 %v1756, 1e-05
  %v1761 = vrsqrt.pop %v1757
  %v1762 = vrsqrt.pop %v1758
  %v1763 = vrsqrt.pop %v1759
  %v1764 = vrsqrt.pop %v1760
  %v1765 = vmul.f32 %v1733, %v1761
  %v1766 = vmul.f32 %v1734, %v1762
  %v1767 = vmul.f32 %v1735, %v1763
  %v1768 = vmul.f32 %v1736, %v1764
  %v1769 = vmul.f32 %v1765, %v112
  %v1770 = vmul.f32 %v1766, %v112
  %v1771 = vmul.f32 %v1767, %v112
  %v1772 = vmul.f32 %v1768, %v112
  %v1773 = vadd.f32 %v1769, %v122
  %v1774 = vadd.f32 %v1770, %v122
  %v1775 = vadd.f32 %v1771, %v122
  %v1776 = vadd.f32 %v1772, %v122
  %v1777 = vld [vmem:[%s7] sm:$0xff]
  %v1778 = vld [vmem:[%s7 + $0x8] sm:$0xff]
  %v1779 = vld [vmem:[%s7 + $0x10] sm:$0xff]
  %v1780 = vld [vmem:[%s7 + $0x18] sm:$0xff]
  %v1782 = vsel %vm54, %v1773, 0
  %v1785 = vsel %vm54, %v1774, 0
  %v1788 = vsel %vm54, %v1775, 0
  %v1791 = vsel %vm54, %v1776, 0
  %1793 = vmatprep.subr.mxu0 0.0
  %1794 = vmatpush1.msra.mxu0 0.0
  %1795 = vmatprep.subr.mxu0 0.0
  %1796 = vmatpush1.msra.mxu0 0.0
  %1797 = vmatprep.subr.mxu0 0.0
  %1798 = vmatpush1.msra.mxu0 0.0
  %1799 = vmatprep.subr.mxu0 0.0
  %1800 = vmatpush1.msra.mxu0 0.0
  %1801 = vmatprep.subr.mxu0 0.0
  %1802 = vmatpush1.msra.mxu0 0.0
  %1803 = vmatprep.subr.mxu0 0.0
  %1804 = vmatpush1.msra.mxu0 0.0
  %1805 = vmatprep.subr.mxu0 0.0
  %1806 = vmatpush1.msra.mxu0 0.0
  %1807 = vmatprep.subr.mxu0 0.0
  %1808 = vmatpush1.msra.mxu0 0.0
  %1809 = vmatprep.subr.mxu0 0.0
  %1810 = vmatpush1.msra.mxu0 0.0
  %1811 = vmatprep.subr.mxu0 0.0
  %1812 = vmatpush1.msra.mxu0 0.0
  %1813 = vmatprep.subr.mxu0 0.0
  %1814 = vmatpush1.msra.mxu0 0.0
  %1815 = vmatprep.subr.mxu0 0.0
  %1816 = vmatpush1.msra.mxu0 0.0
  %1817 = vmatprep.subr.mxu0 0.0
  %1818 = vmatpush1.msra.mxu0 %v1780
  %1819 = vmatprep.subr.mxu0 0.0
  %1820 = vmatpush1.msra.mxu0 %v1779
  %1821 = vmatprep.subr.mxu0 0.0
  %1822 = vmatpush1.msra.mxu0 %v1778
  %1823 = vmatprep.subr.mxu0 0.0
  %1824 = vmatpush1.msra.mxu0 %v1777
  %1825 = vmatprep.subr.mxu0 0.0
  %1826 = vmatpush2.msra.mxu0 0.0
  %1827 = vmatprep.subr.mxu0 0.0
  %1828 = vmatpush2.msra.mxu0 0.0
  %1829 = vmatprep.subr.mxu0 0.0
  %1830 = vmatpush2.msra.mxu0 0.0
  %1831 = vmatprep.subr.mxu0 0.0
  %1832 = vmatpush2.msra.mxu0 0.0
  %1833 = vmatprep.subr.mxu0 0.0
  %1834 = vmatpush2.msra.mxu0 0.0
  %1835 = vmatprep.subr.mxu0 0.0
  %1836 = vmatpush2.msra.mxu0 0.0
  %1837 = vmatprep.subr.mxu0 0.0
  %1838 = vmatpush2.msra.mxu0 0.0
  %1839 = vmatprep.subr.mxu0 0.0
  %1840 = vmatpush2.msra.mxu0 0.0
  %1841 = vmatprep.subr.mxu0 0.0
  %1842 = vmatpush2.msra.mxu0 0.0
  %1843 = vmatprep.subr.mxu0 0.0
  %1844 = vmatpush2.msra.mxu0 0.0
  %1845 = vmatprep.subr.mxu0 0.0
  %1846 = vmatpush2.msra.mxu0 0.0
  %1847 = vmatprep.subr.mxu0 0.0
  %1848 = vmatpush2.msra.mxu0 0.0
  %1849 = vmatprep.subr.mxu0 0.0
  %1850 = vmatpush2.msra.mxu0 0.0
  %1851 = vmatprep.subr.mxu0 0.0
  %1852 = vmatpush2.msra.mxu0 0.0
  %1853 = vmatprep.subr.mxu0 0.0
  %1854 = vmatpush2.msra.mxu0 0.0
  %1855 = vmatprep.subr.mxu0 0.0
  %1856 = vmatpush2.msra.mxu0 0.0
  %1857 = vmatprep.mubr.f32.mxu0 0.0
  %1858 = vmatmul.mubr.f32.gmra.mxu0 %v1782
  %v1859 = vpop.f32.mrf.mxu0
  %v1860 = vadd.f32 %v1773, %v1859
  %v1861 = vpop.f32.mrf.mxu0
  %1862 = vmatprep.mubr.f32.mxu0 0.0
  %1863 = vmatmul.mubr.f32.gmra.mxu0 %v1785
  %v1864 = vpop.f32.mrf.mxu0
  %v1865 = vadd.f32 %v1774, %v1864
  %v1866 = vpop.f32.mrf.mxu0
  %1867 = vmatprep.mubr.f32.mxu0 0.0
  %1868 = vmatmul.mubr.f32.gmra.mxu0 %v1788
  %v1869 = vpop.f32.mrf.mxu0
  %v1870 = vadd.f32 %v1775, %v1869
  %v1871 = vpop.f32.mrf.mxu0
  %1872 = vmatprep.mubr.f32.mxu0 0.0
  %1873 = vmatmul.mubr.f32.gmra.mxu0 %v1791
  %v1874 = vpop.f32.mrf.mxu0
  %v1875 = vadd.f32 %v1776, %v1874
  %v1876 = vpop.f32.mrf.mxu0
  %1877 = vdwg.mxu0
  %1878 = vst.msk [vmem:[%s14] sm:$0xff] %vm54, %v1860
  %1879 = vst.msk [vmem:[%s14 + $0x8] sm:$0xff] %vm54, %v1865
  %1880 = vst.msk [vmem:[%s14 + $0x10] sm:$0xff] %vm54, %v1870
  %1881 = vst.msk [vmem:[%s14 + $0x18] sm:$0xff] %vm54, %v1875
  // Predicated region
  $region58: #{mhsa_forward.1} parent=0 // pred_check
    _
  $region59: #{mhsa_forward.1} parent=0 // pred_check_branch
    %1883 = sbr.rel (0) target = $region61
  $region60: #{mhsa_forward.1} parent=0 // pred_region
    _
  $region61: #{mhsa_forward.1} parent=0 // pred_fallthru
    _
  // Predicated region
  $region62: #{mhsa_forward.1} parent=0 // pred_check
    _
  $region63: #{mhsa_forward.1} parent=0 // pred_check_branch
    %1885 = sbr.rel (0) target = $region65
  $region64: #{mhsa_forward.1} parent=0 // pred_region
    _
  $region65: #{mhsa_forward.1} parent=0 // pred_fallthru
    _

</llo_original>
